<compile_context>
chip_gen: v5e
topology: v5e:2x2
jax: 0.10.0
libtpu: 0.0.40
codegen_flags: <defaults>
</compile_context>

<pallas_src>
import functools

import jax
import jax.numpy as jnp
from jax import lax
from jax.experimental import pallas as pl
from jax.experimental.pallas import tpu as pltpu


def _lstm_gates(pre, h_dim, c):
    """PyTorch LSTM gate nonlinearity. pre: (B, 4H) f32, c: (B, H) f32."""
    i = jax.nn.sigmoid(pre[:, 0 * h_dim:1 * h_dim])
    f = jax.nn.sigmoid(pre[:, 1 * h_dim:2 * h_dim])
    g = jnp.tanh(pre[:, 2 * h_dim:3 * h_dim])
    o = jax.nn.sigmoid(pre[:, 3 * h_dim:4 * h_dim])
    c_new = f * c + i * g
    h_new = o * jnp.tanh(c_new)
    return h_new, c_new


def _lstm_gates_zero_state(pre, h_dim):
    """Gate nonlinearity for the first step (h = c = 0): f*c term vanishes."""
    i = jax.nn.sigmoid(pre[:, 0 * h_dim:1 * h_dim])
    g = jnp.tanh(pre[:, 2 * h_dim:3 * h_dim])
    o = jax.nn.sigmoid(pre[:, 3 * h_dim:4 * h_dim])
    c_new = i * g
    h_new = o * jnp.tanh(c_new)
    return h_new, c_new


def decoder_kernel(x_ref, wih1_ref, b1_ref, wblk_ref, b2_ref, wd_ref, bd_ref,
                   out_ref):
    B = x_ref.shape[0]
    G1 = wih1_ref.shape[1]          # 4 * H1
    H1 = G1 // 4
    G2 = b2_ref.shape[1]            # 4 * H2
    H2 = G2 // 4
    S = out_ref.shape[0] // B

    wblk = wblk_ref[...]            # (H1+H2, G1+G2) bf16: [[whh1, wih2],[0, whh2]]
    wtop = wblk[:H1, :]             # (H1, G1+G2): [whh1 | wih2] rows (peeled step)

    b1 = b1_ref[...]                                          # (1, G1) f32
    # Hoisted bias broadcast (JAX does not CSE broadcast_in_dim inside loops).
    b2 = jnp.broadcast_to(b2_ref[...], (B, G2))               # (B, G2) f32

    # Input is repeated over time -> LSTM1's input-to-hidden projection is
    # constant across timesteps: compute it once (bias b1 folded in).
    xw1 = jnp.dot(x_ref[...].astype(jnp.bfloat16), wih1_ref[...],
                  preferred_element_type=jnp.float32) + b1    # (B, G1) f32

    # ---- peeled step 0 (zero initial states: dot(0, whh) and f*c vanish) ----
    h1, c1 = _lstm_gates_zero_state(xw1, H1)
    mm = jnp.dot(h1.astype(jnp.bfloat16), wtop,
                 preferred_element_type=jnp.float32)          # (B, G1+G2) f32
    rec1 = mm[:, :G1]                                         # h1_0 @ whh1
    h2, c2 = _lstm_gates_zero_state(mm[:, G1:] + b2, H2)
    h2_bf = h2.astype(jnp.bfloat16)
    h2_steps = [h2]                                           # f32 copies for dense

    # ---- steps 1..S-1: ONE block matmul per step on [h1_t | h2_{t-1}] ----
    for _ in range(1, S):
        h1, c1 = _lstm_gates(xw1 + rec1, H1, c1)
        hcat = jnp.concatenate([h1.astype(jnp.bfloat16), h2_bf], axis=-1)
        mm = jnp.dot(hcat, wblk, preferred_element_type=jnp.float32)
        rec1 = mm[:, :G1]                                     # -> next step's pre1
        h2, c2 = _lstm_gates(mm[:, G1:] + b2, H2, c2)         # this step's LSTM2
        h2_bf = h2.astype(jnp.bfloat16)
        h2_steps.append(h2)

    # ---- epilogue: one batched dense matmul + one store (no VMEM scratch) ----
    h2_all = jnp.concatenate(h2_steps, axis=0)                # (S*B, H2) f32
    y = jnp.dot(h2_all.astype(jnp.bfloat16), wd_ref[...],
                preferred_element_type=jnp.float32) + bd_ref[...]
    out_ref[...] = y.astype(out_ref.dtype)


def decoder_forward(x, params, seq_len):
    """x: (batch, input_dim) float32 -> (batch, seq_len, output_dim)."""
    B, D = x.shape
    H1 = params["whh1"].shape[1]        # hidden_dim of lstm1 (== input_dim)
    H2 = params["whh2"].shape[1]        # hidden_dim of lstm2
    out_dim = params["wd"].shape[0]
    f32, bf16 = jnp.float32, jnp.bfloat16

    # Glue: pre-transpose weights, fuse PyTorch's b_ih + b_hh, build the block
    # recurrent weight, cast matmul operands to bf16 (biases stay f32).
    wih1_t = params["wih1"].T.astype(bf16)                        # (D, 4*H1)
    b1 = (params["bih1"] + params["bhh1"]).astype(f32)[None, :]   # (1, 4*H1)

    whh1_t = params["whh1"].T                                     # (H1, 4*H1)
    wih2_t = params["wih2"].T                                     # (H1, 4*H2)
    whh2_t = params["whh2"].T                                     # (H2, 4*H2)
    top = jnp.concatenate([whh1_t, wih2_t], axis=1)               # (H1, 4H1+4H2)
    bot = jnp.concatenate([jnp.zeros((H2, 4 * H1), f32), whh2_t], axis=1)
    wblk = jnp.concatenate([top, bot], axis=0).astype(bf16)       # (H1+H2, 4H1+4H2)

    b2 = (params["bih2"] + params["bhh2"]).astype(f32)[None, :]   # (1, 4*H2)
    wd_t = params["wd"].T.astype(bf16)                            # (H2, out)
    bd = params["bd"].astype(f32)[None, :]                        # (1, out)

    vmem = pl.BlockSpec(memory_space=pltpu.MemorySpace.VMEM)
    out_flat = pl.pallas_call(
        decoder_kernel,
        out_shape=jax.ShapeDtypeStruct((seq_len * B, out_dim), jnp.float32),
        in_specs=[vmem] * 7,
        out_specs=vmem,
    )(x, wih1_t, b1, wblk, b2, wd_t, bd)

    # Rows are time-major (row = t*B + b); out_dim is tiny so the layout fix is
    # a negligible XLA reshape/transpose back to batch_first (B, S, out).
    return out_flat.reshape(seq_len, B, out_dim).transpose(1, 0, 2)


# ---------------- pure-JAX reference (for correctness check) ----------------
def _lstm_ref(x_seq, w_ih, w_hh, b_ih, b_hh):
    H = w_hh.shape[1]
    B = x_seq.shape[0]

    def step(carry, xt):
        h, c = carry
        gates = xt @ w_ih.T + b_ih + h @ w_hh.T + b_hh
        i, f, g, o = jnp.split(gates, 4, axis=-1)
        c = jax.nn.sigmoid(f) * c + jax.nn.sigmoid(i) * jnp.tanh(g)
        h = jax.nn.sigmoid(o) * jnp.tanh(c)
        return (h, c), h

    init = (jnp.zeros((B, H), jnp.float32), jnp.zeros((B, H), jnp.float32))
    _, hs = lax.scan(step, init, jnp.swapaxes(x_seq, 0, 1))
    return jnp.swapaxes(hs, 0, 1)


def decoder_reference(x, params, seq_len):
    x_rep = jnp.repeat(x[:, None, :], seq_len, axis=1)
    h1 = _lstm_ref(x_rep, params["wih1"], params["whh1"],
                   params["bih1"], params["bhh1"])
    h2 = _lstm_ref(h1, params["wih2"], params["whh2"],
                   params["bih2"], params["bhh2"])
    return h2 @ params["wd"].T + params["bd"]


def init_params(key, input_dim, output_dim):
    hidden_dim = 2 * input_dim
    ks = jax.random.split(key, 10)
    u = lambda k, shape, scale: jax.random.uniform(
        k, shape, jnp.float32, -scale, scale)
    s1 = 1.0 / jnp.sqrt(input_dim)
    s2 = 1.0 / jnp.sqrt(hidden_dim)
    return {
        # LSTM1: input_dim -> input_dim
        "wih1": u(ks[0], (4 * input_dim, input_dim), s1),
        "whh1": u(ks[1], (4 * input_dim, input_dim), s1),
        "bih1": u(ks[2], (4 * input_dim,), s1),
        "bhh1": u(ks[3], (4 * input_dim,), s1),
        # LSTM2: input_dim -> hidden_dim
        "wih2": u(ks[4], (4 * hidden_dim, input_dim), s2),
        "whh2": u(ks[5], (4 * hidden_dim, hidden_dim), s2),
        "bih2": u(ks[6], (4 * hidden_dim,), s2),
        "bhh2": u(ks[7], (4 * hidden_dim,), s2),
        # Dense: hidden_dim -> output_dim
        "wd": u(ks[8], (output_dim, hidden_dim), s2),
        "bd": u(ks[9], (output_dim,), s2),
    }


if __name__ == "__main__":
    batch, input_dim, seq_len, output_dim = 2, 32, 8, 1

    key = jax.random.PRNGKey(0)
    kx, kp = jax.random.split(key)
    x = jax.random.normal(kx, (batch, input_dim), jnp.float32)
    params = init_params(kp, input_dim, output_dim)

    fwd = jax.jit(functools.partial(decoder_forward, seq_len=seq_len))
    out = jax.block_until_ready(fwd(x, params))

    ref = decoder_reference(x, params, seq_len)
    assert out.shape == (batch, seq_len, output_dim), out.shape
    # bf16 matmul operands on the recurrent path (f32 accumulation / gate math)
    # -> relaxed tolerance vs the pure-f32 reference.
    max_err = float(jnp.max(jnp.abs(out - ref)))
    assert max_err < 3e-2, max_err

    print("KERNEL_OK")
</pallas_src>

<mosaic_0001>
module attributes {stable_mosaic.version = 11 : i64} {
  func.func @decoder_kernel(%arg0: memref<2x32xf32, #tpu.memory_space<vmem>>, %arg1: memref<32x128xbf16, #tpu.memory_space<vmem>>, %arg2: memref<1x128xf32, #tpu.memory_space<vmem>>, %arg3: memref<96x384xbf16, #tpu.memory_space<vmem>>, %arg4: memref<1x256xf32, #tpu.memory_space<vmem>>, %arg5: memref<64x1xbf16, #tpu.memory_space<vmem>>, %arg6: memref<1x1xf32, #tpu.memory_space<vmem>>, %arg7: memref<16x1xf32, #tpu.memory_space<vmem>>) attributes {dimension_semantics = [], scalar_prefetch = 0 : i64, scratch_operands = 0 : i64, tpu.core_type = #tpu.core_type<tc>} {
    %c0 = arith.constant 0 : index
    %c0_0 = arith.constant 0 : index
    %0 = vector.load %arg3[%c0, %c0_0] : memref<96x384xbf16, #tpu.memory_space<vmem>>, vector<96x384xbf16>
    %1 = vector.extract_strided_slice %0 {offsets = [0, 0], sizes = [32, 384], strides = [1, 1]} : vector<96x384xbf16> to vector<32x384xbf16>
    %c0_1 = arith.constant 0 : index
    %c0_2 = arith.constant 0 : index
    %2 = vector.load %arg2[%c0_1, %c0_2] : memref<1x128xf32, #tpu.memory_space<vmem>>, vector<1x128xf32>
    %c0_3 = arith.constant 0 : index
    %c0_4 = arith.constant 0 : index
    %3 = vector.load %arg4[%c0_3, %c0_4] : memref<1x256xf32, #tpu.memory_space<vmem>>, vector<1x256xf32>
    %4 = vector.shape_cast %3 : vector<1x256xf32> to vector<1x256xf32>
    %5 = vector.broadcast %4 : vector<1x256xf32> to vector<2x256xf32>
    %c0_5 = arith.constant 0 : index
    %c0_6 = arith.constant 0 : index
    %6 = vector.load %arg0[%c0_5, %c0_6] : memref<2x32xf32, #tpu.memory_space<vmem>>, vector<2x32xf32>
    %7 = arith.truncf %6 : vector<2x32xf32> to vector<2x32xbf16>
    %c0_7 = arith.constant 0 : index
    %c0_8 = arith.constant 0 : index
    %8 = vector.load %arg1[%c0_7, %c0_8] : memref<32x128xbf16, #tpu.memory_space<vmem>>, vector<32x128xbf16>
    %cst = arith.constant dense<0.000000e+00> : vector<2x128xf32>
    %9 = tpu.matmul %7, %8, %cst {dimension_numbers = #tpu.dot_dimension_numbers<[1], [0], [0], [1], [0, 0, 1, 1], [], []>} : vector<2x32xbf16>, vector<32x128xbf16>, vector<2x128xf32> -> vector<2x128xf32>
    %10 = vector.broadcast %2 : vector<1x128xf32> to vector<2x128xf32>
    %11 = arith.addf %9, %10 : vector<2x128xf32>
    %12 = vector.extract_strided_slice %11 {offsets = [0, 0], sizes = [2, 32], strides = [1, 1]} : vector<2x128xf32> to vector<2x32xf32>
    %13 = arith.negf %12 : vector<2x32xf32>
    %14 = math.exp %13 : vector<2x32xf32>
    %cst_9 = arith.constant 1.000000e+00 : f32
    %15 = vector.broadcast %cst_9 : f32 to vector<2x32xf32>
    %16 = arith.addf %15, %14 : vector<2x32xf32>
    %17 = arith.divf %15, %16 : vector<2x32xf32>
    %18 = vector.extract_strided_slice %11 {offsets = [0, 64], sizes = [2, 32], strides = [1, 1]} : vector<2x128xf32> to vector<2x32xf32>
    %19 = math.tanh %18 : vector<2x32xf32>
    %20 = vector.extract_strided_slice %11 {offsets = [0, 96], sizes = [2, 32], strides = [1, 1]} : vector<2x128xf32> to vector<2x32xf32>
    %21 = arith.negf %20 : vector<2x32xf32>
    %22 = math.exp %21 : vector<2x32xf32>
    %cst_10 = arith.constant 1.000000e+00 : f32
    %23 = vector.broadcast %cst_10 : f32 to vector<2x32xf32>
    %24 = arith.addf %23, %22 : vector<2x32xf32>
    %25 = arith.divf %23, %24 : vector<2x32xf32>
    %26 = arith.mulf %17, %19 : vector<2x32xf32>
    %27 = math.tanh %26 : vector<2x32xf32>
    %28 = arith.mulf %25, %27 : vector<2x32xf32>
    %29 = arith.truncf %28 : vector<2x32xf32> to vector<2x32xbf16>
    %cst_11 = arith.constant dense<0.000000e+00> : vector<2x384xf32>
    %30 = tpu.matmul %29, %1, %cst_11 {dimension_numbers = #tpu.dot_dimension_numbers<[1], [0], [0], [1], [0, 0, 1, 1], [], []>} : vector<2x32xbf16>, vector<32x384xbf16>, vector<2x384xf32> -> vector<2x384xf32>
    %31 = vector.extract_strided_slice %30 {offsets = [0, 0], sizes = [2, 128], strides = [1, 1]} : vector<2x384xf32> to vector<2x128xf32>
    %32 = vector.extract_strided_slice %30 {offsets = [0, 128], sizes = [2, 256], strides = [1, 1]} : vector<2x384xf32> to vector<2x256xf32>
    %33 = arith.addf %32, %5 : vector<2x256xf32>
    %34 = vector.extract_strided_slice %33 {offsets = [0, 0], sizes = [2, 64], strides = [1, 1]} : vector<2x256xf32> to vector<2x64xf32>
    %35 = arith.negf %34 : vector<2x64xf32>
    %36 = math.exp %35 : vector<2x64xf32>
    %cst_12 = arith.constant 1.000000e+00 : f32
    %37 = vector.broadcast %cst_12 : f32 to vector<2x64xf32>
    %38 = arith.addf %37, %36 : vector<2x64xf32>
    %39 = arith.divf %37, %38 : vector<2x64xf32>
    %40 = vector.extract_strided_slice %33 {offsets = [0, 128], sizes = [2, 64], strides = [1, 1]} : vector<2x256xf32> to vector<2x64xf32>
    %41 = math.tanh %40 : vector<2x64xf32>
    %42 = vector.extract_strided_slice %33 {offsets = [0, 192], sizes = [2, 64], strides = [1, 1]} : vector<2x256xf32> to vector<2x64xf32>
    %43 = arith.negf %42 : vector<2x64xf32>
    %44 = math.exp %43 : vector<2x64xf32>
    %cst_13 = arith.constant 1.000000e+00 : f32
    %45 = vector.broadcast %cst_13 : f32 to vector<2x64xf32>
    %46 = arith.addf %45, %44 : vector<2x64xf32>
    %47 = arith.divf %45, %46 : vector<2x64xf32>
    %48 = arith.mulf %39, %41 : vector<2x64xf32>
    %49 = math.tanh %48 : vector<2x64xf32>
    %50 = arith.mulf %47, %49 : vector<2x64xf32>
    %51 = arith.truncf %50 : vector<2x64xf32> to vector<2x64xbf16>
    %52 = arith.addf %11, %31 : vector<2x128xf32>
    %53 = vector.extract_strided_slice %52 {offsets = [0, 0], sizes = [2, 32], strides = [1, 1]} : vector<2x128xf32> to vector<2x32xf32>
    %54 = arith.negf %53 : vector<2x32xf32>
    %55 = math.exp %54 : vector<2x32xf32>
    %cst_14 = arith.constant 1.000000e+00 : f32
    %56 = vector.broadcast %cst_14 : f32 to vector<2x32xf32>
    %57 = arith.addf %56, %55 : vector<2x32xf32>
    %58 = arith.divf %56, %57 : vector<2x32xf32>
    %59 = vector.extract_strided_slice %52 {offsets = [0, 32], sizes = [2, 32], strides = [1, 1]} : vector<2x128xf32> to vector<2x32xf32>
    %60 = arith.negf %59 : vector<2x32xf32>
    %61 = math.exp %60 : vector<2x32xf32>
    %cst_15 = arith.constant 1.000000e+00 : f32
    %62 = vector.broadcast %cst_15 : f32 to vector<2x32xf32>
    %63 = arith.addf %62, %61 : vector<2x32xf32>
    %64 = arith.divf %62, %63 : vector<2x32xf32>
    %65 = vector.extract_strided_slice %52 {offsets = [0, 64], sizes = [2, 32], strides = [1, 1]} : vector<2x128xf32> to vector<2x32xf32>
    %66 = math.tanh %65 : vector<2x32xf32>
    %67 = vector.extract_strided_slice %52 {offsets = [0, 96], sizes = [2, 32], strides = [1, 1]} : vector<2x128xf32> to vector<2x32xf32>
    %68 = arith.negf %67 : vector<2x32xf32>
    %69 = math.exp %68 : vector<2x32xf32>
    %cst_16 = arith.constant 1.000000e+00 : f32
    %70 = vector.broadcast %cst_16 : f32 to vector<2x32xf32>
    %71 = arith.addf %70, %69 : vector<2x32xf32>
    %72 = arith.divf %70, %71 : vector<2x32xf32>
    %73 = arith.mulf %64, %26 : vector<2x32xf32>
    %74 = arith.mulf %58, %66 : vector<2x32xf32>
    %75 = arith.addf %73, %74 : vector<2x32xf32>
    %76 = math.tanh %75 : vector<2x32xf32>
    %77 = arith.mulf %72, %76 : vector<2x32xf32>
    %78 = arith.truncf %77 : vector<2x32xf32> to vector<2x32xbf16>
    %79 = tpu.concatenate %78, %51 in 1 : vector<2x32xbf16>, vector<2x64xbf16> -> vector<2x96xbf16>
    %cst_17 = arith.constant dense<0.000000e+00> : vector<2x384xf32>
    %80 = tpu.matmul %79, %0, %cst_17 {dimension_numbers = #tpu.dot_dimension_numbers<[1], [0], [0], [1], [0, 0, 1, 1], [], []>} : vector<2x96xbf16>, vector<96x384xbf16>, vector<2x384xf32> -> vector<2x384xf32>
    %81 = vector.extract_strided_slice %80 {offsets = [0, 0], sizes = [2, 128], strides = [1, 1]} : vector<2x384xf32> to vector<2x128xf32>
    %82 = vector.extract_strided_slice %80 {offsets = [0, 128], sizes = [2, 256], strides = [1, 1]} : vector<2x384xf32> to vector<2x256xf32>
    %83 = arith.addf %82, %5 : vector<2x256xf32>
    %84 = vector.extract_strided_slice %83 {offsets = [0, 0], sizes = [2, 64], strides = [1, 1]} : vector<2x256xf32> to vector<2x64xf32>
    %85 = arith.negf %84 : vector<2x64xf32>
    %86 = math.exp %85 : vector<2x64xf32>
    %cst_18 = arith.constant 1.000000e+00 : f32
    %87 = vector.broadcast %cst_18 : f32 to vector<2x64xf32>
    %88 = arith.addf %87, %86 : vector<2x64xf32>
    %89 = arith.divf %87, %88 : vector<2x64xf32>
    %90 = vector.extract_strided_slice %83 {offsets = [0, 64], sizes = [2, 64], strides = [1, 1]} : vector<2x256xf32> to vector<2x64xf32>
    %91 = arith.negf %90 : vector<2x64xf32>
    %92 = math.exp %91 : vector<2x64xf32>
    %cst_19 = arith.constant 1.000000e+00 : f32
    %93 = vector.broadcast %cst_19 : f32 to vector<2x64xf32>
    %94 = arith.addf %93, %92 : vector<2x64xf32>
    %95 = arith.divf %93, %94 : vector<2x64xf32>
    %96 = vector.extract_strided_slice %83 {offsets = [0, 128], sizes = [2, 64], strides = [1, 1]} : vector<2x256xf32> to vector<2x64xf32>
    %97 = math.tanh %96 : vector<2x64xf32>
    %98 = vector.extract_strided_slice %83 {offsets = [0, 192], sizes = [2, 64], strides = [1, 1]} : vector<2x256xf32> to vector<2x64xf32>
    %99 = arith.negf %98 : vector<2x64xf32>
    %100 = math.exp %99 : vector<2x64xf32>
    %cst_20 = arith.constant 1.000000e+00 : f32
    %101 = vector.broadcast %cst_20 : f32 to vector<2x64xf32>
    %102 = arith.addf %101, %100 : vector<2x64xf32>
    %103 = arith.divf %101, %102 : vector<2x64xf32>
    %104 = arith.mulf %95, %48 : vector<2x64xf32>
    %105 = arith.mulf %89, %97 : vector<2x64xf32>
    %106 = arith.addf %104, %105 : vector<2x64xf32>
    %107 = math.tanh %106 : vector<2x64xf32>
    %108 = arith.mulf %103, %107 : vector<2x64xf32>
    %109 = arith.truncf %108 : vector<2x64xf32> to vector<2x64xbf16>
    %110 = arith.addf %11, %81 : vector<2x128xf32>
    %111 = vector.extract_strided_slice %110 {offsets = [0, 0], sizes = [2, 32], strides = [1, 1]} : vector<2x128xf32> to vector<2x32xf32>
    %112 = arith.negf %111 : vector<2x32xf32>
    %113 = math.exp %112 : vector<2x32xf32>
    %cst_21 = arith.constant 1.000000e+00 : f32
    %114 = vector.broadcast %cst_21 : f32 to vector<2x32xf32>
    %115 = arith.addf %114, %113 : vector<2x32xf32>
    %116 = arith.divf %114, %115 : vector<2x32xf32>
    %117 = vector.extract_strided_slice %110 {offsets = [0, 32], sizes = [2, 32], strides = [1, 1]} : vector<2x128xf32> to vector<2x32xf32>
    %118 = arith.negf %117 : vector<2x32xf32>
    %119 = math.exp %118 : vector<2x32xf32>
    %cst_22 = arith.constant 1.000000e+00 : f32
    %120 = vector.broadcast %cst_22 : f32 to vector<2x32xf32>
    %121 = arith.addf %120, %119 : vector<2x32xf32>
    %122 = arith.divf %120, %121 : vector<2x32xf32>
    %123 = vector.extract_strided_slice %110 {offsets = [0, 64], sizes = [2, 32], strides = [1, 1]} : vector<2x128xf32> to vector<2x32xf32>
    %124 = math.tanh %123 : vector<2x32xf32>
    %125 = vector.extract_strided_slice %110 {offsets = [0, 96], sizes = [2, 32], strides = [1, 1]} : vector<2x128xf32> to vector<2x32xf32>
    %126 = arith.negf %125 : vector<2x32xf32>
    %127 = math.exp %126 : vector<2x32xf32>
    %cst_23 = arith.constant 1.000000e+00 : f32
    %128 = vector.broadcast %cst_23 : f32 to vector<2x32xf32>
    %129 = arith.addf %128, %127 : vector<2x32xf32>
    %130 = arith.divf %128, %129 : vector<2x32xf32>
    %131 = arith.mulf %122, %75 : vector<2x32xf32>
    %132 = arith.mulf %116, %124 : vector<2x32xf32>
    %133 = arith.addf %131, %132 : vector<2x32xf32>
    %134 = math.tanh %133 : vector<2x32xf32>
    %135 = arith.mulf %130, %134 : vector<2x32xf32>
    %136 = arith.truncf %135 : vector<2x32xf32> to vector<2x32xbf16>
    %137 = tpu.concatenate %136, %109 in 1 : vector<2x32xbf16>, vector<2x64xbf16> -> vector<2x96xbf16>
    %cst_24 = arith.constant dense<0.000000e+00> : vector<2x384xf32>
    %138 = tpu.matmul %137, %0, %cst_24 {dimension_numbers = #tpu.dot_dimension_numbers<[1], [0], [0], [1], [0, 0, 1, 1], [], []>} : vector<2x96xbf16>, vector<96x384xbf16>, vector<2x384xf32> -> vector<2x384xf32>
    %139 = vector.extract_strided_slice %138 {offsets = [0, 0], sizes = [2, 128], strides = [1, 1]} : vector<2x384xf32> to vector<2x128xf32>
    %140 = vector.extract_strided_slice %138 {offsets = [0, 128], sizes = [2, 256], strides = [1, 1]} : vector<2x384xf32> to vector<2x256xf32>
    %141 = arith.addf %140, %5 : vector<2x256xf32>
    %142 = vector.extract_strided_slice %141 {offsets = [0, 0], sizes = [2, 64], strides = [1, 1]} : vector<2x256xf32> to vector<2x64xf32>
    %143 = arith.negf %142 : vector<2x64xf32>
    %144 = math.exp %143 : vector<2x64xf32>
    %cst_25 = arith.constant 1.000000e+00 : f32
    %145 = vector.broadcast %cst_25 : f32 to vector<2x64xf32>
    %146 = arith.addf %145, %144 : vector<2x64xf32>
    %147 = arith.divf %145, %146 : vector<2x64xf32>
    %148 = vector.extract_strided_slice %141 {offsets = [0, 64], sizes = [2, 64], strides = [1, 1]} : vector<2x256xf32> to vector<2x64xf32>
    %149 = arith.negf %148 : vector<2x64xf32>
    %150 = math.exp %149 : vector<2x64xf32>
    %cst_26 = arith.constant 1.000000e+00 : f32
    %151 = vector.broadcast %cst_26 : f32 to vector<2x64xf32>
    %152 = arith.addf %151, %150 : vector<2x64xf32>
    %153 = arith.divf %151, %152 : vector<2x64xf32>
    %154 = vector.extract_strided_slice %141 {offsets = [0, 128], sizes = [2, 64], strides = [1, 1]} : vector<2x256xf32> to vector<2x64xf32>
    %155 = math.tanh %154 : vector<2x64xf32>
    %156 = vector.extract_strided_slice %141 {offsets = [0, 192], sizes = [2, 64], strides = [1, 1]} : vector<2x256xf32> to vector<2x64xf32>
    %157 = arith.negf %156 : vector<2x64xf32>
    %158 = math.exp %157 : vector<2x64xf32>
    %cst_27 = arith.constant 1.000000e+00 : f32
    %159 = vector.broadcast %cst_27 : f32 to vector<2x64xf32>
    %160 = arith.addf %159, %158 : vector<2x64xf32>
    %161 = arith.divf %159, %160 : vector<2x64xf32>
    %162 = arith.mulf %153, %106 : vector<2x64xf32>
    %163 = arith.mulf %147, %155 : vector<2x64xf32>
    %164 = arith.addf %162, %163 : vector<2x64xf32>
    %165 = math.tanh %164 : vector<2x64xf32>
    %166 = arith.mulf %161, %165 : vector<2x64xf32>
    %167 = arith.truncf %166 : vector<2x64xf32> to vector<2x64xbf16>
    %168 = arith.addf %11, %139 : vector<2x128xf32>
    %169 = vector.extract_strided_slice %168 {offsets = [0, 0], sizes = [2, 32], strides = [1, 1]} : vector<2x128xf32> to vector<2x32xf32>
    %170 = arith.negf %169 : vector<2x32xf32>
    %171 = math.exp %170 : vector<2x32xf32>
    %cst_28 = arith.constant 1.000000e+00 : f32
    %172 = vector.broadcast %cst_28 : f32 to vector<2x32xf32>
    %173 = arith.addf %172, %171 : vector<2x32xf32>
    %174 = arith.divf %172, %173 : vector<2x32xf32>
    %175 = vector.extract_strided_slice %168 {offsets = [0, 32], sizes = [2, 32], strides = [1, 1]} : vector<2x128xf32> to vector<2x32xf32>
    %176 = arith.negf %175 : vector<2x32xf32>
    %177 = math.exp %176 : vector<2x32xf32>
    %cst_29 = arith.constant 1.000000e+00 : f32
    %178 = vector.broadcast %cst_29 : f32 to vector<2x32xf32>
    %179 = arith.addf %178, %177 : vector<2x32xf32>
    %180 = arith.divf %178, %179 : vector<2x32xf32>
    %181 = vector.extract_strided_slice %168 {offsets = [0, 64], sizes = [2, 32], strides = [1, 1]} : vector<2x128xf32> to vector<2x32xf32>
    %182 = math.tanh %181 : vector<2x32xf32>
    %183 = vector.extract_strided_slice %168 {offsets = [0, 96], sizes = [2, 32], strides = [1, 1]} : vector<2x128xf32> to vector<2x32xf32>
    %184 = arith.negf %183 : vector<2x32xf32>
    %185 = math.exp %184 : vector<2x32xf32>
    %cst_30 = arith.constant 1.000000e+00 : f32
    %186 = vector.broadcast %cst_30 : f32 to vector<2x32xf32>
    %187 = arith.addf %186, %185 : vector<2x32xf32>
    %188 = arith.divf %186, %187 : vector<2x32xf32>
    %189 = arith.mulf %180, %133 : vector<2x32xf32>
    %190 = arith.mulf %174, %182 : vector<2x32xf32>
    %191 = arith.addf %189, %190 : vector<2x32xf32>
    %192 = math.tanh %191 : vector<2x32xf32>
    %193 = arith.mulf %188, %192 : vector<2x32xf32>
    %194 = arith.truncf %193 : vector<2x32xf32> to vector<2x32xbf16>
    %195 = tpu.concatenate %194, %167 in 1 : vector<2x32xbf16>, vector<2x64xbf16> -> vector<2x96xbf16>
    %cst_31 = arith.constant dense<0.000000e+00> : vector<2x384xf32>
    %196 = tpu.matmul %195, %0, %cst_31 {dimension_numbers = #tpu.dot_dimension_numbers<[1], [0], [0], [1], [0, 0, 1, 1], [], []>} : vector<2x96xbf16>, vector<96x384xbf16>, vector<2x384xf32> -> vector<2x384xf32>
    %197 = vector.extract_strided_slice %196 {offsets = [0, 0], sizes = [2, 128], strides = [1, 1]} : vector<2x384xf32> to vector<2x128xf32>
    %198 = vector.extract_strided_slice %196 {offsets = [0, 128], sizes = [2, 256], strides = [1, 1]} : vector<2x384xf32> to vector<2x256xf32>
    %199 = arith.addf %198, %5 : vector<2x256xf32>
    %200 = vector.extract_strided_slice %199 {offsets = [0, 0], sizes = [2, 64], strides = [1, 1]} : vector<2x256xf32> to vector<2x64xf32>
    %201 = arith.negf %200 : vector<2x64xf32>
    %202 = math.exp %201 : vector<2x64xf32>
    %cst_32 = arith.constant 1.000000e+00 : f32
    %203 = vector.broadcast %cst_32 : f32 to vector<2x64xf32>
    %204 = arith.addf %203, %202 : vector<2x64xf32>
    %205 = arith.divf %203, %204 : vector<2x64xf32>
    %206 = vector.extract_strided_slice %199 {offsets = [0, 64], sizes = [2, 64], strides = [1, 1]} : vector<2x256xf32> to vector<2x64xf32>
    %207 = arith.negf %206 : vector<2x64xf32>
    %208 = math.exp %207 : vector<2x64xf32>
    %cst_33 = arith.constant 1.000000e+00 : f32
    %209 = vector.broadcast %cst_33 : f32 to vector<2x64xf32>
    %210 = arith.addf %209, %208 : vector<2x64xf32>
    %211 = arith.divf %209, %210 : vector<2x64xf32>
    %212 = vector.extract_strided_slice %199 {offsets = [0, 128], sizes = [2, 64], strides = [1, 1]} : vector<2x256xf32> to vector<2x64xf32>
    %213 = math.tanh %212 : vector<2x64xf32>
    %214 = vector.extract_strided_slice %199 {offsets = [0, 192], sizes = [2, 64], strides = [1, 1]} : vector<2x256xf32> to vector<2x64xf32>
    %215 = arith.negf %214 : vector<2x64xf32>
    %216 = math.exp %215 : vector<2x64xf32>
    %cst_34 = arith.constant 1.000000e+00 : f32
    %217 = vector.broadcast %cst_34 : f32 to vector<2x64xf32>
    %218 = arith.addf %217, %216 : vector<2x64xf32>
    %219 = arith.divf %217, %218 : vector<2x64xf32>
    %220 = arith.mulf %211, %164 : vector<2x64xf32>
    %221 = arith.mulf %205, %213 : vector<2x64xf32>
    %222 = arith.addf %220, %221 : vector<2x64xf32>
    %223 = math.tanh %222 : vector<2x64xf32>
    %224 = arith.mulf %219, %223 : vector<2x64xf32>
    %225 = arith.truncf %224 : vector<2x64xf32> to vector<2x64xbf16>
    %226 = arith.addf %11, %197 : vector<2x128xf32>
    %227 = vector.extract_strided_slice %226 {offsets = [0, 0], sizes = [2, 32], strides = [1, 1]} : vector<2x128xf32> to vector<2x32xf32>
    %228 = arith.negf %227 : vector<2x32xf32>
    %229 = math.exp %228 : vector<2x32xf32>
    %cst_35 = arith.constant 1.000000e+00 : f32
    %230 = vector.broadcast %cst_35 : f32 to vector<2x32xf32>
    %231 = arith.addf %230, %229 : vector<2x32xf32>
    %232 = arith.divf %230, %231 : vector<2x32xf32>
    %233 = vector.extract_strided_slice %226 {offsets = [0, 32], sizes = [2, 32], strides = [1, 1]} : vector<2x128xf32> to vector<2x32xf32>
    %234 = arith.negf %233 : vector<2x32xf32>
    %235 = math.exp %234 : vector<2x32xf32>
    %cst_36 = arith.constant 1.000000e+00 : f32
    %236 = vector.broadcast %cst_36 : f32 to vector<2x32xf32>
    %237 = arith.addf %236, %235 : vector<2x32xf32>
    %238 = arith.divf %236, %237 : vector<2x32xf32>
    %239 = vector.extract_strided_slice %226 {offsets = [0, 64], sizes = [2, 32], strides = [1, 1]} : vector<2x128xf32> to vector<2x32xf32>
    %240 = math.tanh %239 : vector<2x32xf32>
    %241 = vector.extract_strided_slice %226 {offsets = [0, 96], sizes = [2, 32], strides = [1, 1]} : vector<2x128xf32> to vector<2x32xf32>
    %242 = arith.negf %241 : vector<2x32xf32>
    %243 = math.exp %242 : vector<2x32xf32>
    %cst_37 = arith.constant 1.000000e+00 : f32
    %244 = vector.broadcast %cst_37 : f32 to vector<2x32xf32>
    %245 = arith.addf %244, %243 : vector<2x32xf32>
    %246 = arith.divf %244, %245 : vector<2x32xf32>
    %247 = arith.mulf %238, %191 : vector<2x32xf32>
    %248 = arith.mulf %232, %240 : vector<2x32xf32>
    %249 = arith.addf %247, %248 : vector<2x32xf32>
    %250 = math.tanh %249 : vector<2x32xf32>
    %251 = arith.mulf %246, %250 : vector<2x32xf32>
    %252 = arith.truncf %251 : vector<2x32xf32> to vector<2x32xbf16>
    %253 = tpu.concatenate %252, %225 in 1 : vector<2x32xbf16>, vector<2x64xbf16> -> vector<2x96xbf16>
    %cst_38 = arith.constant dense<0.000000e+00> : vector<2x384xf32>
    %254 = tpu.matmul %253, %0, %cst_38 {dimension_numbers = #tpu.dot_dimension_numbers<[1], [0], [0], [1], [0, 0, 1, 1], [], []>} : vector<2x96xbf16>, vector<96x384xbf16>, vector<2x384xf32> -> vector<2x384xf32>
    %255 = vector.extract_strided_slice %254 {offsets = [0, 0], sizes = [2, 128], strides = [1, 1]} : vector<2x384xf32> to vector<2x128xf32>
    %256 = vector.extract_strided_slice %254 {offsets = [0, 128], sizes = [2, 256], strides = [1, 1]} : vector<2x384xf32> to vector<2x256xf32>
    %257 = arith.addf %256, %5 : vector<2x256xf32>
    %258 = vector.extract_strided_slice %257 {offsets = [0, 0], sizes = [2, 64], strides = [1, 1]} : vector<2x256xf32> to vector<2x64xf32>
    %259 = arith.negf %258 : vector<2x64xf32>
    %260 = math.exp %259 : vector<2x64xf32>
    %cst_39 = arith.constant 1.000000e+00 : f32
    %261 = vector.broadcast %cst_39 : f32 to vector<2x64xf32>
    %262 = arith.addf %261, %260 : vector<2x64xf32>
    %263 = arith.divf %261, %262 : vector<2x64xf32>
    %264 = vector.extract_strided_slice %257 {offsets = [0, 64], sizes = [2, 64], strides = [1, 1]} : vector<2x256xf32> to vector<2x64xf32>
    %265 = arith.negf %264 : vector<2x64xf32>
    %266 = math.exp %265 : vector<2x64xf32>
    %cst_40 = arith.constant 1.000000e+00 : f32
    %267 = vector.broadcast %cst_40 : f32 to vector<2x64xf32>
    %268 = arith.addf %267, %266 : vector<2x64xf32>
    %269 = arith.divf %267, %268 : vector<2x64xf32>
    %270 = vector.extract_strided_slice %257 {offsets = [0, 128], sizes = [2, 64], strides = [1, 1]} : vector<2x256xf32> to vector<2x64xf32>
    %271 = math.tanh %270 : vector<2x64xf32>
    %272 = vector.extract_strided_slice %257 {offsets = [0, 192], sizes = [2, 64], strides = [1, 1]} : vector<2x256xf32> to vector<2x64xf32>
    %273 = arith.negf %272 : vector<2x64xf32>
    %274 = math.exp %273 : vector<2x64xf32>
    %cst_41 = arith.constant 1.000000e+00 : f32
    %275 = vector.broadcast %cst_41 : f32 to vector<2x64xf32>
    %276 = arith.addf %275, %274 : vector<2x64xf32>
    %277 = arith.divf %275, %276 : vector<2x64xf32>
    %278 = arith.mulf %269, %222 : vector<2x64xf32>
    %279 = arith.mulf %263, %271 : vector<2x64xf32>
    %280 = arith.addf %278, %279 : vector<2x64xf32>
    %281 = math.tanh %280 : vector<2x64xf32>
    %282 = arith.mulf %277, %281 : vector<2x64xf32>
    %283 = arith.truncf %282 : vector<2x64xf32> to vector<2x64xbf16>
    %284 = arith.addf %11, %255 : vector<2x128xf32>
    %285 = vector.extract_strided_slice %284 {offsets = [0, 0], sizes = [2, 32], strides = [1, 1]} : vector<2x128xf32> to vector<2x32xf32>
    %286 = arith.negf %285 : vector<2x32xf32>
    %287 = math.exp %286 : vector<2x32xf32>
    %cst_42 = arith.constant 1.000000e+00 : f32
    %288 = vector.broadcast %cst_42 : f32 to vector<2x32xf32>
    %289 = arith.addf %288, %287 : vector<2x32xf32>
    %290 = arith.divf %288, %289 : vector<2x32xf32>
    %291 = vector.extract_strided_slice %284 {offsets = [0, 32], sizes = [2, 32], strides = [1, 1]} : vector<2x128xf32> to vector<2x32xf32>
    %292 = arith.negf %291 : vector<2x32xf32>
    %293 = math.exp %292 : vector<2x32xf32>
    %cst_43 = arith.constant 1.000000e+00 : f32
    %294 = vector.broadcast %cst_43 : f32 to vector<2x32xf32>
    %295 = arith.addf %294, %293 : vector<2x32xf32>
    %296 = arith.divf %294, %295 : vector<2x32xf32>
    %297 = vector.extract_strided_slice %284 {offsets = [0, 64], sizes = [2, 32], strides = [1, 1]} : vector<2x128xf32> to vector<2x32xf32>
    %298 = math.tanh %297 : vector<2x32xf32>
    %299 = vector.extract_strided_slice %284 {offsets = [0, 96], sizes = [2, 32], strides = [1, 1]} : vector<2x128xf32> to vector<2x32xf32>
    %300 = arith.negf %299 : vector<2x32xf32>
    %301 = math.exp %300 : vector<2x32xf32>
    %cst_44 = arith.constant 1.000000e+00 : f32
    %302 = vector.broadcast %cst_44 : f32 to vector<2x32xf32>
    %303 = arith.addf %302, %301 : vector<2x32xf32>
    %304 = arith.divf %302, %303 : vector<2x32xf32>
    %305 = arith.mulf %296, %249 : vector<2x32xf32>
    %306 = arith.mulf %290, %298 : vector<2x32xf32>
    %307 = arith.addf %305, %306 : vector<2x32xf32>
    %308 = math.tanh %307 : vector<2x32xf32>
    %309 = arith.mulf %304, %308 : vector<2x32xf32>
    %310 = arith.truncf %309 : vector<2x32xf32> to vector<2x32xbf16>
    %311 = tpu.concatenate %310, %283 in 1 : vector<2x32xbf16>, vector<2x64xbf16> -> vector<2x96xbf16>
    %cst_45 = arith.constant dense<0.000000e+00> : vector<2x384xf32>
    %312 = tpu.matmul %311, %0, %cst_45 {dimension_numbers = #tpu.dot_dimension_numbers<[1], [0], [0], [1], [0, 0, 1, 1], [], []>} : vector<2x96xbf16>, vector<96x384xbf16>, vector<2x384xf32> -> vector<2x384xf32>
    %313 = vector.extract_strided_slice %312 {offsets = [0, 0], sizes = [2, 128], strides = [1, 1]} : vector<2x384xf32> to vector<2x128xf32>
    %314 = vector.extract_strided_slice %312 {offsets = [0, 128], sizes = [2, 256], strides = [1, 1]} : vector<2x384xf32> to vector<2x256xf32>
    %315 = arith.addf %314, %5 : vector<2x256xf32>
    %316 = vector.extract_strided_slice %315 {offsets = [0, 0], sizes = [2, 64], strides = [1, 1]} : vector<2x256xf32> to vector<2x64xf32>
    %317 = arith.negf %316 : vector<2x64xf32>
    %318 = math.exp %317 : vector<2x64xf32>
    %cst_46 = arith.constant 1.000000e+00 : f32
    %319 = vector.broadcast %cst_46 : f32 to vector<2x64xf32>
    %320 = arith.addf %319, %318 : vector<2x64xf32>
    %321 = arith.divf %319, %320 : vector<2x64xf32>
    %322 = vector.extract_strided_slice %315 {offsets = [0, 64], sizes = [2, 64], strides = [1, 1]} : vector<2x256xf32> to vector<2x64xf32>
    %323 = arith.negf %322 : vector<2x64xf32>
    %324 = math.exp %323 : vector<2x64xf32>
    %cst_47 = arith.constant 1.000000e+00 : f32
    %325 = vector.broadcast %cst_47 : f32 to vector<2x64xf32>
    %326 = arith.addf %325, %324 : vector<2x64xf32>
    %327 = arith.divf %325, %326 : vector<2x64xf32>
    %328 = vector.extract_strided_slice %315 {offsets = [0, 128], sizes = [2, 64], strides = [1, 1]} : vector<2x256xf32> to vector<2x64xf32>
    %329 = math.tanh %328 : vector<2x64xf32>
    %330 = vector.extract_strided_slice %315 {offsets = [0, 192], sizes = [2, 64], strides = [1, 1]} : vector<2x256xf32> to vector<2x64xf32>
    %331 = arith.negf %330 : vector<2x64xf32>
    %332 = math.exp %331 : vector<2x64xf32>
    %cst_48 = arith.constant 1.000000e+00 : f32
    %333 = vector.broadcast %cst_48 : f32 to vector<2x64xf32>
    %334 = arith.addf %333, %332 : vector<2x64xf32>
    %335 = arith.divf %333, %334 : vector<2x64xf32>
    %336 = arith.mulf %327, %280 : vector<2x64xf32>
    %337 = arith.mulf %321, %329 : vector<2x64xf32>
    %338 = arith.addf %336, %337 : vector<2x64xf32>
    %339 = math.tanh %338 : vector<2x64xf32>
    %340 = arith.mulf %335, %339 : vector<2x64xf32>
    %341 = arith.truncf %340 : vector<2x64xf32> to vector<2x64xbf16>
    %342 = arith.addf %11, %313 : vector<2x128xf32>
    %343 = vector.extract_strided_slice %342 {offsets = [0, 0], sizes = [2, 32], strides = [1, 1]} : vector<2x128xf32> to vector<2x32xf32>
    %344 = arith.negf %343 : vector<2x32xf32>
    %345 = math.exp %344 : vector<2x32xf32>
    %cst_49 = arith.constant 1.000000e+00 : f32
    %346 = vector.broadcast %cst_49 : f32 to vector<2x32xf32>
    %347 = arith.addf %346, %345 : vector<2x32xf32>
    %348 = arith.divf %346, %347 : vector<2x32xf32>
    %349 = vector.extract_strided_slice %342 {offsets = [0, 32], sizes = [2, 32], strides = [1, 1]} : vector<2x128xf32> to vector<2x32xf32>
    %350 = arith.negf %349 : vector<2x32xf32>
    %351 = math.exp %350 : vector<2x32xf32>
    %cst_50 = arith.constant 1.000000e+00 : f32
    %352 = vector.broadcast %cst_50 : f32 to vector<2x32xf32>
    %353 = arith.addf %352, %351 : vector<2x32xf32>
    %354 = arith.divf %352, %353 : vector<2x32xf32>
    %355 = vector.extract_strided_slice %342 {offsets = [0, 64], sizes = [2, 32], strides = [1, 1]} : vector<2x128xf32> to vector<2x32xf32>
    %356 = math.tanh %355 : vector<2x32xf32>
    %357 = vector.extract_strided_slice %342 {offsets = [0, 96], sizes = [2, 32], strides = [1, 1]} : vector<2x128xf32> to vector<2x32xf32>
    %358 = arith.negf %357 : vector<2x32xf32>
    %359 = math.exp %358 : vector<2x32xf32>
    %cst_51 = arith.constant 1.000000e+00 : f32
    %360 = vector.broadcast %cst_51 : f32 to vector<2x32xf32>
    %361 = arith.addf %360, %359 : vector<2x32xf32>
    %362 = arith.divf %360, %361 : vector<2x32xf32>
    %363 = arith.mulf %354, %307 : vector<2x32xf32>
    %364 = arith.mulf %348, %356 : vector<2x32xf32>
    %365 = arith.addf %363, %364 : vector<2x32xf32>
    %366 = math.tanh %365 : vector<2x32xf32>
    %367 = arith.mulf %362, %366 : vector<2x32xf32>
    %368 = arith.truncf %367 : vector<2x32xf32> to vector<2x32xbf16>
    %369 = tpu.concatenate %368, %341 in 1 : vector<2x32xbf16>, vector<2x64xbf16> -> vector<2x96xbf16>
    %cst_52 = arith.constant dense<0.000000e+00> : vector<2x384xf32>
    %370 = tpu.matmul %369, %0, %cst_52 {dimension_numbers = #tpu.dot_dimension_numbers<[1], [0], [0], [1], [0, 0, 1, 1], [], []>} : vector<2x96xbf16>, vector<96x384xbf16>, vector<2x384xf32> -> vector<2x384xf32>
    %371 = vector.extract_strided_slice %370 {offsets = [0, 0], sizes = [2, 128], strides = [1, 1]} : vector<2x384xf32> to vector<2x128xf32>
    %372 = vector.extract_strided_slice %370 {offsets = [0, 128], sizes = [2, 256], strides = [1, 1]} : vector<2x384xf32> to vector<2x256xf32>
    %373 = arith.addf %372, %5 : vector<2x256xf32>
    %374 = vector.extract_strided_slice %373 {offsets = [0, 0], sizes = [2, 64], strides = [1, 1]} : vector<2x256xf32> to vector<2x64xf32>
    %375 = arith.negf %374 : vector<2x64xf32>
    %376 = math.exp %375 : vector<2x64xf32>
    %cst_53 = arith.constant 1.000000e+00 : f32
    %377 = vector.broadcast %cst_53 : f32 to vector<2x64xf32>
    %378 = arith.addf %377, %376 : vector<2x64xf32>
    %379 = arith.divf %377, %378 : vector<2x64xf32>
    %380 = vector.extract_strided_slice %373 {offsets = [0, 64], sizes = [2, 64], strides = [1, 1]} : vector<2x256xf32> to vector<2x64xf32>
    %381 = arith.negf %380 : vector<2x64xf32>
    %382 = math.exp %381 : vector<2x64xf32>
    %cst_54 = arith.constant 1.000000e+00 : f32
    %383 = vector.broadcast %cst_54 : f32 to vector<2x64xf32>
    %384 = arith.addf %383, %382 : vector<2x64xf32>
    %385 = arith.divf %383, %384 : vector<2x64xf32>
    %386 = vector.extract_strided_slice %373 {offsets = [0, 128], sizes = [2, 64], strides = [1, 1]} : vector<2x256xf32> to vector<2x64xf32>
    %387 = math.tanh %386 : vector<2x64xf32>
    %388 = vector.extract_strided_slice %373 {offsets = [0, 192], sizes = [2, 64], strides = [1, 1]} : vector<2x256xf32> to vector<2x64xf32>
    %389 = arith.negf %388 : vector<2x64xf32>
    %390 = math.exp %389 : vector<2x64xf32>
    %cst_55 = arith.constant 1.000000e+00 : f32
    %391 = vector.broadcast %cst_55 : f32 to vector<2x64xf32>
    %392 = arith.addf %391, %390 : vector<2x64xf32>
    %393 = arith.divf %391, %392 : vector<2x64xf32>
    %394 = arith.mulf %385, %338 : vector<2x64xf32>
    %395 = arith.mulf %379, %387 : vector<2x64xf32>
    %396 = arith.addf %394, %395 : vector<2x64xf32>
    %397 = math.tanh %396 : vector<2x64xf32>
    %398 = arith.mulf %393, %397 : vector<2x64xf32>
    %399 = arith.truncf %398 : vector<2x64xf32> to vector<2x64xbf16>
    %400 = arith.addf %11, %371 : vector<2x128xf32>
    %401 = vector.extract_strided_slice %400 {offsets = [0, 0], sizes = [2, 32], strides = [1, 1]} : vector<2x128xf32> to vector<2x32xf32>
    %402 = arith.negf %401 : vector<2x32xf32>
    %403 = math.exp %402 : vector<2x32xf32>
    %cst_56 = arith.constant 1.000000e+00 : f32
    %404 = vector.broadcast %cst_56 : f32 to vector<2x32xf32>
    %405 = arith.addf %404, %403 : vector<2x32xf32>
    %406 = arith.divf %404, %405 : vector<2x32xf32>
    %407 = vector.extract_strided_slice %400 {offsets = [0, 32], sizes = [2, 32], strides = [1, 1]} : vector<2x128xf32> to vector<2x32xf32>
    %408 = arith.negf %407 : vector<2x32xf32>
    %409 = math.exp %408 : vector<2x32xf32>
    %cst_57 = arith.constant 1.000000e+00 : f32
    %410 = vector.broadcast %cst_57 : f32 to vector<2x32xf32>
    %411 = arith.addf %410, %409 : vector<2x32xf32>
    %412 = arith.divf %410, %411 : vector<2x32xf32>
    %413 = vector.extract_strided_slice %400 {offsets = [0, 64], sizes = [2, 32], strides = [1, 1]} : vector<2x128xf32> to vector<2x32xf32>
    %414 = math.tanh %413 : vector<2x32xf32>
    %415 = vector.extract_strided_slice %400 {offsets = [0, 96], sizes = [2, 32], strides = [1, 1]} : vector<2x128xf32> to vector<2x32xf32>
    %416 = arith.negf %415 : vector<2x32xf32>
    %417 = math.exp %416 : vector<2x32xf32>
    %cst_58 = arith.constant 1.000000e+00 : f32
    %418 = vector.broadcast %cst_58 : f32 to vector<2x32xf32>
    %419 = arith.addf %418, %417 : vector<2x32xf32>
    %420 = arith.divf %418, %419 : vector<2x32xf32>
    %421 = arith.mulf %412, %365 : vector<2x32xf32>
    %422 = arith.mulf %406, %414 : vector<2x32xf32>
    %423 = arith.addf %421, %422 : vector<2x32xf32>
    %424 = math.tanh %423 : vector<2x32xf32>
    %425 = arith.mulf %420, %424 : vector<2x32xf32>
    %426 = arith.truncf %425 : vector<2x32xf32> to vector<2x32xbf16>
    %427 = tpu.concatenate %426, %399 in 1 : vector<2x32xbf16>, vector<2x64xbf16> -> vector<2x96xbf16>
    %cst_59 = arith.constant dense<0.000000e+00> : vector<2x384xf32>
    %428 = tpu.matmul %427, %0, %cst_59 {dimension_numbers = #tpu.dot_dimension_numbers<[1], [0], [0], [1], [0, 0, 1, 1], [], []>} : vector<2x96xbf16>, vector<96x384xbf16>, vector<2x384xf32> -> vector<2x384xf32>
    %429 = vector.extract_strided_slice %428 {offsets = [0, 128], sizes = [2, 256], strides = [1, 1]} : vector<2x384xf32> to vector<2x256xf32>
    %430 = arith.addf %429, %5 : vector<2x256xf32>
    %431 = vector.extract_strided_slice %430 {offsets = [0, 0], sizes = [2, 64], strides = [1, 1]} : vector<2x256xf32> to vector<2x64xf32>
    %432 = arith.negf %431 : vector<2x64xf32>
    %433 = math.exp %432 : vector<2x64xf32>
    %cst_60 = arith.constant 1.000000e+00 : f32
    %434 = vector.broadcast %cst_60 : f32 to vector<2x64xf32>
    %435 = arith.addf %434, %433 : vector<2x64xf32>
    %436 = arith.divf %434, %435 : vector<2x64xf32>
    %437 = vector.extract_strided_slice %430 {offsets = [0, 64], sizes = [2, 64], strides = [1, 1]} : vector<2x256xf32> to vector<2x64xf32>
    %438 = arith.negf %437 : vector<2x64xf32>
    %439 = math.exp %438 : vector<2x64xf32>
    %cst_61 = arith.constant 1.000000e+00 : f32
    %440 = vector.broadcast %cst_61 : f32 to vector<2x64xf32>
    %441 = arith.addf %440, %439 : vector<2x64xf32>
    %442 = arith.divf %440, %441 : vector<2x64xf32>
    %443 = vector.extract_strided_slice %430 {offsets = [0, 128], sizes = [2, 64], strides = [1, 1]} : vector<2x256xf32> to vector<2x64xf32>
    %444 = math.tanh %443 : vector<2x64xf32>
    %445 = vector.extract_strided_slice %430 {offsets = [0, 192], sizes = [2, 64], strides = [1, 1]} : vector<2x256xf32> to vector<2x64xf32>
    %446 = arith.negf %445 : vector<2x64xf32>
    %447 = math.exp %446 : vector<2x64xf32>
    %cst_62 = arith.constant 1.000000e+00 : f32
    %448 = vector.broadcast %cst_62 : f32 to vector<2x64xf32>
    %449 = arith.addf %448, %447 : vector<2x64xf32>
    %450 = arith.divf %448, %449 : vector<2x64xf32>
    %451 = arith.mulf %442, %396 : vector<2x64xf32>
    %452 = arith.mulf %436, %444 : vector<2x64xf32>
    %453 = arith.addf %451, %452 : vector<2x64xf32>
    %454 = math.tanh %453 : vector<2x64xf32>
    %455 = arith.mulf %450, %454 : vector<2x64xf32>
    %456 = tpu.concatenate %50, %108, %166, %224, %282, %340, %398, %455 in 0 : vector<2x64xf32>, vector<2x64xf32>, vector<2x64xf32>, vector<2x64xf32>, vector<2x64xf32>, vector<2x64xf32>, vector<2x64xf32>, vector<2x64xf32> -> vector<16x64xf32>
    %457 = arith.truncf %456 : vector<16x64xf32> to vector<16x64xbf16>
    %c0_63 = arith.constant 0 : index
    %c0_64 = arith.constant 0 : index
    %458 = vector.load %arg5[%c0_63, %c0_64] : memref<64x1xbf16, #tpu.memory_space<vmem>>, vector<64x1xbf16>
    %cst_65 = arith.constant dense<0.000000e+00> : vector<16x1xf32>
    %459 = tpu.matmul %457, %458, %cst_65 {dimension_numbers = #tpu.dot_dimension_numbers<[1], [0], [0], [1], [0, 0, 1, 1], [], []>} : vector<16x64xbf16>, vector<64x1xbf16>, vector<16x1xf32> -> vector<16x1xf32>
    %c0_66 = arith.constant 0 : index
    %c0_67 = arith.constant 0 : index
    %460 = vector.load %arg6[%c0_66, %c0_67] : memref<1x1xf32, #tpu.memory_space<vmem>>, vector<1x1xf32>
    %461 = vector.broadcast %460 : vector<1x1xf32> to vector<16x1xf32>
    %462 = arith.addf %459, %461 : vector<16x1xf32>
    %c0_68 = arith.constant 0 : index
    %c0_69 = arith.constant 0 : index
    %463 = vector.load %arg7[%c0_68, %c0_69] : memref<16x1xf32, #tpu.memory_space<vmem>>, vector<16x1xf32>
    tpu.vector_store %arg7[%c0_68, %c0_69], %462 {strides = array<i32>} : memref<16x1xf32, #tpu.memory_space<vmem>>, vector<16x1xf32>,
    return
  }
}

</mosaic_0001>

<llo_original>
// kernel: decoder_forward.1
$region0: #{decoder_forward.1}
  #allocation0 [shape = 'u32[]', space=smem, size = 0x4, offset = 0x4, fixed_abs, tag = 'smem constant byte address 0x4 - core index']
  #allocation1 [shape = 'u32[72,128]{1,0:T(1,128)}', space=vmem, size = 0x9000, scoped, tag = 'internal scratch']
  #allocation2 [shape = 'f32[1,1]{1,0:T(1,128)S(1)}', space=vmem, size = 0x200, scoped, tag = 'scoped memory for decoder_forward.1']
  %s0 = inlined_call_operand.vmem [shape: f32[2,32], index: 0, kind: input, shape index: {}]
  %s1 = inlined_call_operand.vmem [shape: bf16[32,128], index: 1, kind: input, shape index: {}]
  %s2 = inlined_call_operand.vmem [shape: f32[1,128], index: 2, kind: input, shape index: {}]
  %s3 = inlined_call_operand.vmem [shape: bf16[96,384], index: 3, kind: input, shape index: {}]
  %s4 = inlined_call_operand.vmem [shape: f32[1,256], index: 4, kind: input, shape index: {}]
  %s5 = inlined_call_operand.vmem [shape: bf16[64,1], index: 5, kind: input, shape index: {}]
  %s6 = inlined_call_operand.<no memory space> [shape: f32[1,1], index: 6, kind: input, shape index: {}]
  %s7 = inlined_call_operand.vmem [shape: f32[16,1], index: 7, kind: output, shape index: {}]
  %s8 = sld [smem:[#allocation0]]
  $region38: #{decoder_forward.1} parent=0
    _
  %s10 = ssub.s32 1, %s8
  %s11 = scalar_select 0, %s10, %s8
  %v12 = vstv %s6
  %13 = vst [vmem:[#allocation2] sm:$0x1] %v12
  // Predicated region
  $region2: #{decoder_forward.1} parent=0 // pred_check
    _
  $region3: #{decoder_forward.1} parent=0 // pred_check_branch
    %15 = sbr.rel (0) target = $region5
  $region4: #{decoder_forward.1} parent=0 // pred_region
    _
  $region5: #{decoder_forward.1} parent=0 // pred_fallthru
    _
  // Predicated region
  $region6: #{decoder_forward.1} parent=0 // pred_check
    _
  $region7: #{decoder_forward.1} parent=0 // pred_check_branch
    %17 = sbr.rel (0) target = $region9
  $region8: #{decoder_forward.1} parent=0 // pred_region
    _
  $region9: #{decoder_forward.1} parent=0 // pred_fallthru
    _
  // Predicated region
  $region10: #{decoder_forward.1} parent=0 // pred_check
    _
  $region11: #{decoder_forward.1} parent=0 // pred_check_branch
    %19 = sbr.rel (0) target = $region13
  $region12: #{decoder_forward.1} parent=0 // pred_region
    _
  $region13: #{decoder_forward.1} parent=0 // pred_fallthru
    _
  // Predicated region
  $region14: #{decoder_forward.1} parent=0 // pred_check
    _
  $region15: #{decoder_forward.1} parent=0 // pred_check_branch
    %21 = sbr.rel (0) target = $region17
  $region16: #{decoder_forward.1} parent=0 // pred_region
    _
  $region17: #{decoder_forward.1} parent=0 // pred_fallthru
    _
  // Predicated region
  $region18: #{decoder_forward.1} parent=0 // pred_check
    _
  $region19: #{decoder_forward.1} parent=0 // pred_check_branch
    %23 = sbr.rel (0) target = $region21
  $region20: #{decoder_forward.1} parent=0 // pred_region
    _
  $region21: #{decoder_forward.1} parent=0 // pred_fallthru
    _
  // Predicated region
  $region22: #{decoder_forward.1} parent=0 // pred_check
    _
  $region23: #{decoder_forward.1} parent=0 // pred_check_branch
    %25 = sbr.rel (0) target = $region25
  $region24: #{decoder_forward.1} parent=0 // pred_region
    _
  $region25: #{decoder_forward.1} parent=0 // pred_fallthru
    _
  // Predicated region
  $region26: #{decoder_forward.1} parent=0 // pred_check
    _
  $region27: #{decoder_forward.1} parent=0 // pred_check_branch
    %27 = sbr.rel (0) target = $region29
  $region28: #{decoder_forward.1} parent=0 // pred_region
    _
  $region29: #{decoder_forward.1} parent=0 // pred_fallthru
    _
  %v29 = vld [vmem:[%s3] sm:$0xff]
  %v30 = vld [vmem:[%s3 + $0x8] sm:$0xf]
  %v31 = vld [vmem:[%s3 + $0xc] sm:$0xff]
  %v32 = vld [vmem:[%s3 + $0x14] sm:$0xf]
  %v33 = vld [vmem:[%s3 + $0x18] sm:$0xff]
  %v34 = vld [vmem:[%s3 + $0x20] sm:$0xf]
  %v35 = vld [vmem:[%s3 + $0x24] sm:$0xff]
  %v36 = vld [vmem:[%s3 + $0x2c] sm:$0xf]
  %v37 = vld [vmem:[%s3 + $0x30] sm:$0xff]
  %v38 = vld [vmem:[%s3 + $0x38] sm:$0xf]
  %v39 = vld [vmem:[%s3 + $0x3c] sm:$0xff]
  %v40 = vld [vmem:[%s3 + $0x44] sm:$0xf]
  %v41 = vld [vmem:[%s3 + $0x48] sm:$0xff]
  %v42 = vld [vmem:[%s3 + $0x50] sm:$0xf]
  %v43 = vld [vmem:[%s3 + $0x54] sm:$0xff]
  %v44 = vld [vmem:[%s3 + $0x5c] sm:$0xf]
  %v45 = vld [vmem:[%s3 + $0x60] sm:$0xff]
  %v46 = vld [vmem:[%s3 + $0x68] sm:$0xf]
  %v47 = vld [vmem:[%s3 + $0x6c] sm:$0xff]
  %v48 = vld [vmem:[%s3 + $0x74] sm:$0xf]
  %v49 = vld [vmem:[%s3 + $0x78] sm:$0xff]
  %v50 = vld [vmem:[%s3 + $0x80] sm:$0xf]
  %v51 = vld [vmem:[%s3 + $0x84] sm:$0xff]
  %v52 = vld [vmem:[%s3 + $0x8c] sm:$0xf]
  %v53 = vld [vmem:[%s2] sm:$0x1]
  %v54 = vld [vmem:[%s4] sm:$0x3]
  %v56 = vperm.slane %v54, 0
  %v57 = vperm.slane %v54, 1
  %v60 = vld [vmem:[%s0] sm:$0x3]
  %v61 = vpack.c.bf16 %v60, %v60
  %v62 = vld [vmem:[%s1] sm:$0xf]
  %v63 = vld [vmem:[%s1 + $0x4] sm:$0xf]
  %v64 = vld [vmem:[%s1 + $0x8] sm:$0xf]
  %v65 = vld [vmem:[%s1 + $0xc] sm:$0xf]
  %v67 = vperm.slane %v53, 0
  %v73 = vunpack.c.l.b16 %v62
  %v74 = vunpack.c.l.b16 %v63
  %v75 = vunpack.c.l.b16 %v64
  %v76 = vunpack.c.l.b16 %v65
  %v77 = vpack.c.b16 %v74, %v73
  %v78 = vpack.c.b16 %v76, %v75
  %vm81 = vcmask 261120
  %v83 = vsel %vm81, %v61, 0
  %85 = vmatpush.bf16.msra.mxu0 0
  %86 = vmatpush.bf16.msra.mxu0 0
  %87 = vmatpush.bf16.msra.mxu0 0
  %88 = vmatpush.bf16.msra.mxu0 0
  %89 = vmatpush.bf16.msra.mxu0 0
  %90 = vmatpush.bf16.msra.mxu0 0
  %91 = vmatpush.bf16.msra.mxu0 %v78
  %92 = vmatpush.bf16.msra.mxu0 %v77
  %93 = vmatmul.bf16.gmra.mxu0 %v83
  %v94 = vpop.f32.mrf.mxu0
  %v95 = vadd.f32 %v67, %v94
  %v96 = vpop.f32.mrf.mxu0
  %97 = vdwg.mxu0
  %v98 = vxor.u32 %v95, 2147483648
  %v99 = vmul.f32 %v98, 1.442695
  %v100 = vpow.pop %v99
  %v101 = vadd.f32 %v100, 1.0
  %v102 = vrcp.pop %v101
  %v103 = vmul.f32 %v101, %v102
  %v104 = vsub.f32 1.0, %v103
  %v105 = vmul.f32 %v102, %v104
  %v106 = vadd.f32 %v102, %v105
  %vm107 = vweird.f32 %v101
  %vm108 = vweird.f32 %v102
  %vm109 = vmor %vm107, %vm108
  %v110 = vsel %vm109, %v102, %v106
  %v111 = vand.u32 2147483647, %v101
  %vm112 = vcmp.eq.f32.partialorder %v111, 8.507059e+37
  %v113 = vand.u32 %v101, 2147483648
  %v114 = vor.u32 1.1754944e-38, %v113
  %v115 = vsel %vm112, %v114, %v110
  %v116 = vmul.f32 1.0, %v115
  %v117 = vtanh.pop %v95
  %119 = vrot.lane.b32.xlu0 %v117, 64
  %v120 = vpop.permute.xlu0 %119
  %v122 = vmul.f32 %v116, %v120
  %v123 = vtanh.pop %v122
  %125 = vrot.lane.b32.xlu0 %v123, 96
  %v126 = vpop.permute.xlu0 %125
  %v128 = vmul.f32 %v116, %v126
  %v129 = vpack.c.bf16 %v128, %v128
  %131 = vrot.lane.b32.xlu0 %v129, 32
  %v132 = vpop.permute.xlu0 %131
  %v141 = vunpack.c.l.b16 %v29
  %v142 = vunpack.c.h.b16 %v29
  %v143 = vunpack.c.l.b16 %v30
  %v144 = vunpack.c.l.b16 %v31
  %v145 = vunpack.c.h.b16 %v31
  %v146 = vunpack.c.l.b16 %v32
  %v147 = vunpack.c.l.b16 %v33
  %v148 = vunpack.c.h.b16 %v33
  %v149 = vunpack.c.l.b16 %v34
  %v150 = vunpack.c.l.b16 %v35
  %v151 = vunpack.c.h.b16 %v35
  %v152 = vunpack.c.l.b16 %v36
  %v153 = vpack.c.b16 %v144, %v141
  %v154 = vpack.c.b16 %v145, %v142
  %v155 = vpack.c.b16 %v146, %v143
  %v156 = vpack.c.b16 %v150, %v147
  %v157 = vpack.c.b16 %v151, %v148
  %v158 = vpack.c.b16 %v152, %v149
  %v166 = vsel %vm81, %v132, 0
  %168 = vmatpush.bf16.msra.mxu0 0
  %169 = vmatpush.bf16.msra.mxu0 0
  %170 = vmatpush.bf16.msra.mxu0 0
  %171 = vmatpush.bf16.msra.mxu0 0
  %172 = vmatpush.bf16.msra.mxu0 0
  %173 = vmatpush.bf16.msra.mxu0 0
  %174 = vmatpush.bf16.msra.mxu0 %v156
  %175 = vmatpush.bf16.msra.mxu0 %v153
  %176 = vmatmul.bf16.gmra.mxu0 %v166
  %v177 = vpop.f32.mrf.mxu0
  %v178 = vadd.f32 0.0, %v177
  %v179 = vpop.f32.mrf.mxu0
  %180 = vdwg.mxu0
  %181 = vmatpush.bf16.msra.mxu0 0
  %182 = vmatpush.bf16.msra.mxu0 0
  %183 = vmatpush.bf16.msra.mxu0 0
  %184 = vmatpush.bf16.msra.mxu0 0
  %185 = vmatpush.bf16.msra.mxu0 0
  %186 = vmatpush.bf16.msra.mxu0 0
  %187 = vmatpush.bf16.msra.mxu0 %v157
  %188 = vmatpush.bf16.msra.mxu0 %v154
  %189 = vmatmul.bf16.gmra.mxu0 %v166
  %v190 = vpop.f32.mrf.mxu0
  %v191 = vadd.f32 0.0, %v190
  %v192 = vpop.f32.mrf.mxu0
  %193 = vdwg.mxu0
  %194 = vmatpush.bf16.msra.mxu0 0
  %195 = vmatpush.bf16.msra.mxu0 0
  %196 = vmatpush.bf16.msra.mxu0 0
  %197 = vmatpush.bf16.msra.mxu0 0
  %198 = vmatpush.bf16.msra.mxu0 0
  %199 = vmatpush.bf16.msra.mxu0 0
  %200 = vmatpush.bf16.msra.mxu0 %v158
  %201 = vmatpush.bf16.msra.mxu0 %v155
  %202 = vmatmul.bf16.gmra.mxu0 %v166
  %v203 = vpop.f32.mrf.mxu0
  %v204 = vadd.f32 0.0, %v203
  %v205 = vpop.f32.mrf.mxu0
  %206 = vdwg.mxu0
  %v207 = vadd.f32 %v191, %v56
  %v208 = vadd.f32 %v204, %v57
  %v209 = vxor.u32 %v207, 2147483648
  %v210 = vmul.f32 %v209, 1.442695
  %v211 = vpow.pop %v210
  %v212 = vadd.f32 %v211, 1.0
  %v213 = vrcp.pop %v212
  %v214 = vmul.f32 %v212, %v213
  %v215 = vsub.f32 1.0, %v214
  %v216 = vmul.f32 %v213, %v215
  %v217 = vadd.f32 %v213, %v216
  %vm218 = vweird.f32 %v212
  %vm219 = vweird.f32 %v213
  %vm220 = vmor %vm218, %vm219
  %v221 = vsel %vm220, %v213, %v217
  %v222 = vand.u32 2147483647, %v212
  %vm223 = vcmp.eq.f32.partialorder %v222, 8.507059e+37
  %v224 = vand.u32 %v212, 2147483648
  %v225 = vor.u32 1.1754944e-38, %v224
  %v226 = vsel %vm223, %v225, %v221
  %v227 = vmul.f32 1.0, %v226
  %v228 = vtanh.pop %v208
  %v229 = vxor.u32 %v208, 2147483648
  %v230 = vmul.f32 %v229, 1.442695
  %v231 = vpow.pop %v230
  %v232 = vadd.f32 %v231, 1.0
  %v233 = vrcp.pop %v232
  %v234 = vmul.f32 %v232, %v233
  %v235 = vsub.f32 1.0, %v234
  %v236 = vmul.f32 %v233, %v235
  %v237 = vadd.f32 %v233, %v236
  %vm238 = vweird.f32 %v232
  %vm239 = vweird.f32 %v233
  %vm240 = vmor %vm238, %vm239
  %v241 = vsel %vm240, %v233, %v237
  %v242 = vand.u32 2147483647, %v232
  %vm243 = vcmp.eq.f32.partialorder %v242, 8.507059e+37
  %v244 = vand.u32 %v232, 2147483648
  %v245 = vor.u32 1.1754944e-38, %v244
  %v246 = vsel %vm243, %v245, %v241
  %v247 = vmul.f32 1.0, %v246
  %v248 = vmul.f32 %v227, %v228
  %v249 = vtanh.pop %v248
  %251 = vrot.lane.b32.xlu0 %v249, 64
  %v252 = vpop.permute.xlu0 %251
  %v254 = vmul.f32 %v247, %v252
  %v255 = vpack.c.bf16 %v254, %v254
  %v256 = vadd.f32 %v95, %v178
  %v257 = vxor.u32 %v256, 2147483648
  %v258 = vmul.f32 %v257, 1.442695
  %v259 = vpow.pop %v258
  %v260 = vadd.f32 %v259, 1.0
  %v261 = vrcp.pop %v260
  %v262 = vmul.f32 %v260, %v261
  %v263 = vsub.f32 1.0, %v262
  %v264 = vmul.f32 %v261, %v263
  %v265 = vadd.f32 %v261, %v264
  %vm266 = vweird.f32 %v260
  %vm267 = vweird.f32 %v261
  %vm268 = vmor %vm266, %vm267
  %v269 = vsel %vm268, %v261, %v265
  %v270 = vand.u32 2147483647, %v260
  %vm271 = vcmp.eq.f32.partialorder %v270, 8.507059e+37
  %v272 = vand.u32 %v260, 2147483648
  %v273 = vor.u32 1.1754944e-38, %v272
  %v274 = vsel %vm271, %v273, %v269
  %v275 = vmul.f32 1.0, %v274
  %v276 = vtanh.pop %v256
  %278 = vrot.lane.b32.xlu0 %v122, 32
  %v279 = vpop.permute.xlu0 %278
  %v281 = vmul.f32 %v275, %v279
  %283 = vrot.lane.b32.xlu0 %v276, 64
  %v284 = vpop.permute.xlu0 %283
  %v286 = vmul.f32 %v275, %v284
  %288 = vrot.lane.b32.xlu0 %v286, 32
  %v289 = vpop.permute.xlu0 %288
  %v291 = vadd.f32 %v281, %v289
  %v292 = vtanh.pop %v291
  %294 = vrot.lane.b32.xlu0 %v292, 64
  %v295 = vpop.permute.xlu0 %294
  %v297 = vmul.f32 %v275, %v295
  %v298 = vpack.c.bf16 %v297, %v297
  %v300 = vunpack.c.l.b16 %v298
  %v301 = vpack.c.b16 %v300, %v300
  %302 = vrot.lane.b32.xlu0 %v301, 32
  %v303 = vpop.permute.xlu0 %302
  %v305 = vunpack.c.l.b16 %v255
  %v306 = vpack.c.b16 %v305, %v305
  %307 = vrot.lane.b32.xlu0 %v306, 96
  %v308 = vpop.permute.xlu0 %307
  %v311 = vsel %vm81, %v303, %v308
  %v328 = vunpack.c.l.b16 %v37
  %v329 = vunpack.c.h.b16 %v37
  %v330 = vunpack.c.l.b16 %v38
  %v331 = vunpack.c.l.b16 %v39
  %v332 = vunpack.c.h.b16 %v39
  %v333 = vunpack.c.l.b16 %v40
  %v334 = vunpack.c.l.b16 %v41
  %v335 = vunpack.c.h.b16 %v41
  %v336 = vunpack.c.l.b16 %v42
  %v337 = vunpack.c.l.b16 %v43
  %v338 = vunpack.c.h.b16 %v43
  %v339 = vunpack.c.l.b16 %v44
  %v340 = vunpack.c.l.b16 %v45
  %v341 = vunpack.c.h.b16 %v45
  %v342 = vunpack.c.l.b16 %v46
  %v343 = vunpack.c.l.b16 %v47
  %v344 = vunpack.c.h.b16 %v47
  %v345 = vunpack.c.l.b16 %v48
  %v346 = vunpack.c.l.b16 %v49
  %v347 = vunpack.c.h.b16 %v49
  %v348 = vunpack.c.l.b16 %v50
  %v349 = vunpack.c.l.b16 %v51
  %v350 = vunpack.c.h.b16 %v51
  %v351 = vunpack.c.l.b16 %v52
  %v352 = vpack.c.b16 %v331, %v328
  %v353 = vpack.c.b16 %v332, %v329
  %v354 = vpack.c.b16 %v333, %v330
  %v355 = vpack.c.b16 %v337, %v334
  %v356 = vpack.c.b16 %v338, %v335
  %v357 = vpack.c.b16 %v339, %v336
  %v358 = vpack.c.b16 %v343, %v340
  %v359 = vpack.c.b16 %v344, %v341
  %v360 = vpack.c.b16 %v345, %v342
  %v361 = vpack.c.b16 %v349, %v346
  %v362 = vpack.c.b16 %v350, %v347
  %v363 = vpack.c.b16 %v351, %v348
  %vm376 = vcmask 785408
  %v377 = vsel %vm376, %v311, 0
  %379 = vmatpush.bf16.msra.mxu0 0
  %380 = vmatpush.bf16.msra.mxu0 0
  %381 = vmatpush.bf16.msra.mxu0 %v361
  %382 = vmatpush.bf16.msra.mxu0 %v358
  %383 = vmatpush.bf16.msra.mxu0 %v355
  %384 = vmatpush.bf16.msra.mxu0 %v352
  %385 = vmatpush.bf16.msra.mxu0 %v156
  %386 = vmatpush.bf16.msra.mxu0 %v153
  %387 = vmatmul.bf16.gmra.mxu0 %v377
  %v388 = vpop.f32.mrf.mxu0
  %v389 = vadd.f32 0.0, %v388
  %v390 = vpop.f32.mrf.mxu0
  %391 = vdwg.mxu0
  %392 = vmatpush.bf16.msra.mxu0 0
  %393 = vmatpush.bf16.msra.mxu0 0
  %394 = vmatpush.bf16.msra.mxu0 %v362
  %395 = vmatpush.bf16.msra.mxu0 %v359
  %396 = vmatpush.bf16.msra.mxu0 %v356
  %397 = vmatpush.bf16.msra.mxu0 %v353
  %398 = vmatpush.bf16.msra.mxu0 %v157
  %399 = vmatpush.bf16.msra.mxu0 %v154
  %400 = vmatmul.bf16.gmra.mxu0 %v377
  %v401 = vpop.f32.mrf.mxu0
  %v402 = vadd.f32 0.0, %v401
  %v403 = vpop.f32.mrf.mxu0
  %404 = vdwg.mxu0
  %405 = vmatpush.bf16.msra.mxu0 0
  %406 = vmatpush.bf16.msra.mxu0 0
  %407 = vmatpush.bf16.msra.mxu0 %v363
  %408 = vmatpush.bf16.msra.mxu0 %v360
  %409 = vmatpush.bf16.msra.mxu0 %v357
  %410 = vmatpush.bf16.msra.mxu0 %v354
  %411 = vmatpush.bf16.msra.mxu0 %v158
  %412 = vmatpush.bf16.msra.mxu0 %v155
  %413 = vmatmul.bf16.gmra.mxu0 %v377
  %v414 = vpop.f32.mrf.mxu0
  %v415 = vadd.f32 0.0, %v414
  %v416 = vpop.f32.mrf.mxu0
  %417 = vdwg.mxu0
  %v418 = vadd.f32 %v402, %v56
  %v419 = vadd.f32 %v415, %v57
  %v420 = vxor.u32 %v418, 2147483648
  %v421 = vmul.f32 %v420, 1.442695
  %v422 = vpow.pop %v421
  %v423 = vadd.f32 %v422, 1.0
  %v424 = vrcp.pop %v423
  %v425 = vmul.f32 %v423, %v424
  %v426 = vsub.f32 1.0, %v425
  %v427 = vmul.f32 %v424, %v426
  %v428 = vadd.f32 %v424, %v427
  %vm429 = vweird.f32 %v423
  %vm430 = vweird.f32 %v424
  %vm431 = vmor %vm429, %vm430
  %v432 = vsel %vm431, %v424, %v428
  %v433 = vand.u32 2147483647, %v423
  %vm434 = vcmp.eq.f32.partialorder %v433, 8.507059e+37
  %v435 = vand.u32 %v423, 2147483648
  %v436 = vor.u32 1.1754944e-38, %v435
  %v437 = vsel %vm434, %v436, %v432
  %v438 = vmul.f32 1.0, %v437
  %v439 = vtanh.pop %v419
  %v440 = vxor.u32 %v419, 2147483648
  %v441 = vmul.f32 %v440, 1.442695
  %v442 = vpow.pop %v441
  %v443 = vadd.f32 %v442, 1.0
  %v444 = vrcp.pop %v443
  %v445 = vmul.f32 %v443, %v444
  %v446 = vsub.f32 1.0, %v445
  %v447 = vmul.f32 %v444, %v446
  %v448 = vadd.f32 %v444, %v447
  %vm449 = vweird.f32 %v443
  %vm450 = vweird.f32 %v444
  %vm451 = vmor %vm449, %vm450
  %v452 = vsel %vm451, %v444, %v448
  %v453 = vand.u32 2147483647, %v443
  %vm454 = vcmp.eq.f32.partialorder %v453, 8.507059e+37
  %v455 = vand.u32 %v443, 2147483648
  %v456 = vor.u32 1.1754944e-38, %v455
  %v457 = vsel %vm454, %v456, %v452
  %v458 = vmul.f32 1.0, %v457
  %460 = vrot.lane.b32.xlu0 %v248, 64
  %v461 = vpop.permute.xlu0 %460
  %v463 = vmul.f32 %v438, %v461
  %v464 = vmul.f32 %v438, %v439
  %466 = vrot.lane.b32.xlu0 %v464, 64
  %v467 = vpop.permute.xlu0 %466
  %v469 = vadd.f32 %v463, %v467
  %v470 = vtanh.pop %v469
  %v471 = vmul.f32 %v458, %v470
  %v472 = vpack.c.bf16 %v471, %v471
  %v473 = vadd.f32 %v95, %v389
  %v474 = vxor.u32 %v473, 2147483648
  %v475 = vmul.f32 %v474, 1.442695
  %v476 = vpow.pop %v475
  %v477 = vadd.f32 %v476, 1.0
  %v478 = vrcp.pop %v477
  %v479 = vmul.f32 %v477, %v478
  %v480 = vsub.f32 1.0, %v479
  %v481 = vmul.f32 %v478, %v480
  %v482 = vadd.f32 %v478, %v481
  %vm483 = vweird.f32 %v477
  %vm484 = vweird.f32 %v478
  %vm485 = vmor %vm483, %vm484
  %v486 = vsel %vm485, %v478, %v482
  %v487 = vand.u32 2147483647, %v477
  %vm488 = vcmp.eq.f32.partialorder %v487, 8.507059e+37
  %v489 = vand.u32 %v477, 2147483648
  %v490 = vor.u32 1.1754944e-38, %v489
  %v491 = vsel %vm488, %v490, %v486
  %v492 = vmul.f32 1.0, %v491
  %v493 = vtanh.pop %v473
  %v494 = vmul.f32 %v492, %v291
  %496 = vrot.lane.b32.xlu0 %v493, 64
  %v497 = vpop.permute.xlu0 %496
  %v499 = vmul.f32 %v492, %v497
  %501 = vrot.lane.b32.xlu0 %v499, 32
  %v502 = vpop.permute.xlu0 %501
  %v504 = vadd.f32 %v494, %v502
  %v505 = vtanh.pop %v504
  %507 = vrot.lane.b32.xlu0 %v505, 64
  %v508 = vpop.permute.xlu0 %507
  %v510 = vmul.f32 %v492, %v508
  %v511 = vpack.c.bf16 %v510, %v510
  %v513 = vunpack.c.l.b16 %v511
  %v514 = vpack.c.b16 %v513, %v513
  %515 = vrot.lane.b32.xlu0 %v514, 32
  %v516 = vpop.permute.xlu0 %515
  %v518 = vunpack.c.l.b16 %v472
  %v519 = vpack.c.b16 %v518, %v518
  %520 = vrot.lane.b32.xlu0 %v519, 96
  %v521 = vpop.permute.xlu0 %520
  %v524 = vsel %vm81, %v516, %v521
  %v525 = vsel %vm376, %v524, 0
  %527 = vmatpush.bf16.msra.mxu0 0
  %528 = vmatpush.bf16.msra.mxu0 0
  %529 = vmatpush.bf16.msra.mxu0 %v361
  %530 = vmatpush.bf16.msra.mxu0 %v358
  %531 = vmatpush.bf16.msra.mxu0 %v355
  %532 = vmatpush.bf16.msra.mxu0 %v352
  %533 = vmatpush.bf16.msra.mxu0 %v156
  %534 = vmatpush.bf16.msra.mxu0 %v153
  %535 = vmatmul.bf16.gmra.mxu0 %v525
  %v536 = vpop.f32.mrf.mxu0
  %v537 = vadd.f32 0.0, %v536
  %v538 = vpop.f32.mrf.mxu0
  %539 = vdwg.mxu0
  %540 = vmatpush.bf16.msra.mxu0 0
  %541 = vmatpush.bf16.msra.mxu0 0
  %542 = vmatpush.bf16.msra.mxu0 %v362
  %543 = vmatpush.bf16.msra.mxu0 %v359
  %544 = vmatpush.bf16.msra.mxu0 %v356
  %545 = vmatpush.bf16.msra.mxu0 %v353
  %546 = vmatpush.bf16.msra.mxu0 %v157
  %547 = vmatpush.bf16.msra.mxu0 %v154
  %548 = vmatmul.bf16.gmra.mxu0 %v525
  %v549 = vpop.f32.mrf.mxu0
  %v550 = vadd.f32 0.0, %v549
  %v551 = vpop.f32.mrf.mxu0
  %552 = vdwg.mxu0
  %553 = vmatpush.bf16.msra.mxu0 0
  %554 = vmatpush.bf16.msra.mxu0 0
  %555 = vmatpush.bf16.msra.mxu0 %v363
  %556 = vmatpush.bf16.msra.mxu0 %v360
  %557 = vmatpush.bf16.msra.mxu0 %v357
  %558 = vmatpush.bf16.msra.mxu0 %v354
  %559 = vmatpush.bf16.msra.mxu0 %v158
  %560 = vmatpush.bf16.msra.mxu0 %v155
  %561 = vmatmul.bf16.gmra.mxu0 %v525
  %v562 = vpop.f32.mrf.mxu0
  %v563 = vadd.f32 0.0, %v562
  %v564 = vpop.f32.mrf.mxu0
  %565 = vdwg.mxu0
  %v566 = vadd.f32 %v550, %v56
  %v567 = vadd.f32 %v563, %v57
  %v568 = vxor.u32 %v566, 2147483648
  %v569 = vmul.f32 %v568, 1.442695
  %v570 = vpow.pop %v569
  %v571 = vadd.f32 %v570, 1.0
  %v572 = vrcp.pop %v571
  %v573 = vmul.f32 %v571, %v572
  %v574 = vsub.f32 1.0, %v573
  %v575 = vmul.f32 %v572, %v574
  %v576 = vadd.f32 %v572, %v575
  %vm577 = vweird.f32 %v571
  %vm578 = vweird.f32 %v572
  %vm579 = vmor %vm577, %vm578
  %v580 = vsel %vm579, %v572, %v576
  %v581 = vand.u32 2147483647, %v571
  %vm582 = vcmp.eq.f32.partialorder %v581, 8.507059e+37
  %v583 = vand.u32 %v571, 2147483648
  %v584 = vor.u32 1.1754944e-38, %v583
  %v585 = vsel %vm582, %v584, %v580
  %v586 = vmul.f32 1.0, %v585
  %v587 = vtanh.pop %v567
  %v588 = vxor.u32 %v567, 2147483648
  %v589 = vmul.f32 %v588, 1.442695
  %v590 = vpow.pop %v589
  %v591 = vadd.f32 %v590, 1.0
  %v592 = vrcp.pop %v591
  %v593 = vmul.f32 %v591, %v592
  %v594 = vsub.f32 1.0, %v593
  %v595 = vmul.f32 %v592, %v594
  %v596 = vadd.f32 %v592, %v595
  %vm597 = vweird.f32 %v591
  %vm598 = vweird.f32 %v592
  %vm599 = vmor %vm597, %vm598
  %v600 = vsel %vm599, %v592, %v596
  %v601 = vand.u32 2147483647, %v591
  %vm602 = vcmp.eq.f32.partialorder %v601, 8.507059e+37
  %v603 = vand.u32 %v591, 2147483648
  %v604 = vor.u32 1.1754944e-38, %v603
  %v605 = vsel %vm602, %v604, %v600
  %v606 = vmul.f32 1.0, %v605
  %v607 = vmul.f32 %v586, %v469
  %v608 = vmul.f32 %v586, %v587
  %610 = vrot.lane.b32.xlu0 %v608, 64
  %v611 = vpop.permute.xlu0 %610
  %v613 = vadd.f32 %v607, %v611
  %v614 = vtanh.pop %v613
  %v615 = vmul.f32 %v606, %v614
  %v616 = vpack.c.bf16 %v615, %v615
  %v617 = vadd.f32 %v95, %v537
  %v618 = vxor.u32 %v617, 2147483648
  %v619 = vmul.f32 %v618, 1.442695
  %v620 = vpow.pop %v619
  %v621 = vadd.f32 %v620, 1.0
  %v622 = vrcp.pop %v621
  %v623 = vmul.f32 %v621, %v622
  %v624 = vsub.f32 1.0, %v623
  %v625 = vmul.f32 %v622, %v624
  %v626 = vadd.f32 %v622, %v625
  %vm627 = vweird.f32 %v621
  %vm628 = vweird.f32 %v622
  %vm629 = vmor %vm627, %vm628
  %v630 = vsel %vm629, %v622, %v626
  %v631 = vand.u32 2147483647, %v621
  %vm632 = vcmp.eq.f32.partialorder %v631, 8.507059e+37
  %v633 = vand.u32 %v621, 2147483648
  %v634 = vor.u32 1.1754944e-38, %v633
  %v635 = vsel %vm632, %v634, %v630
  %v636 = vmul.f32 1.0, %v635
  %v637 = vtanh.pop %v617
  %v638 = vmul.f32 %v636, %v504
  %640 = vrot.lane.b32.xlu0 %v637, 64
  %v641 = vpop.permute.xlu0 %640
  %v643 = vmul.f32 %v636, %v641
  %645 = vrot.lane.b32.xlu0 %v643, 32
  %v646 = vpop.permute.xlu0 %645
  %v648 = vadd.f32 %v638, %v646
  %v649 = vtanh.pop %v648
  %651 = vrot.lane.b32.xlu0 %v649, 64
  %v652 = vpop.permute.xlu0 %651
  %v654 = vmul.f32 %v636, %v652
  %v655 = vpack.c.bf16 %v654, %v654
  %v657 = vunpack.c.l.b16 %v655
  %v658 = vpack.c.b16 %v657, %v657
  %659 = vrot.lane.b32.xlu0 %v658, 32
  %v660 = vpop.permute.xlu0 %659
  %v662 = vunpack.c.l.b16 %v616
  %v663 = vpack.c.b16 %v662, %v662
  %664 = vrot.lane.b32.xlu0 %v663, 96
  %v665 = vpop.permute.xlu0 %664
  %v668 = vsel %vm81, %v660, %v665
  %v669 = vsel %vm376, %v668, 0
  %671 = vmatpush.bf16.msra.mxu0 0
  %672 = vmatpush.bf16.msra.mxu0 0
  %673 = vmatpush.bf16.msra.mxu0 %v361
  %674 = vmatpush.bf16.msra.mxu0 %v358
  %675 = vmatpush.bf16.msra.mxu0 %v355
  %676 = vmatpush.bf16.msra.mxu0 %v352
  %677 = vmatpush.bf16.msra.mxu0 %v156
  %678 = vmatpush.bf16.msra.mxu0 %v153
  %679 = vmatmul.bf16.gmra.mxu0 %v669
  %v680 = vpop.f32.mrf.mxu0
  %v681 = vadd.f32 0.0, %v680
  %v682 = vpop.f32.mrf.mxu0
  %683 = vdwg.mxu0
  %684 = vmatpush.bf16.msra.mxu0 0
  %685 = vmatpush.bf16.msra.mxu0 0
  %686 = vmatpush.bf16.msra.mxu0 %v362
  %687 = vmatpush.bf16.msra.mxu0 %v359
  %688 = vmatpush.bf16.msra.mxu0 %v356
  %689 = vmatpush.bf16.msra.mxu0 %v353
  %690 = vmatpush.bf16.msra.mxu0 %v157
  %691 = vmatpush.bf16.msra.mxu0 %v154
  %692 = vmatmul.bf16.gmra.mxu0 %v669
  %v693 = vpop.f32.mrf.mxu0
  %v694 = vadd.f32 0.0, %v693
  %v695 = vpop.f32.mrf.mxu0
  %696 = vdwg.mxu0
  %697 = vmatpush.bf16.msra.mxu0 0
  %698 = vmatpush.bf16.msra.mxu0 0
  %699 = vmatpush.bf16.msra.mxu0 %v363
  %700 = vmatpush.bf16.msra.mxu0 %v360
  %701 = vmatpush.bf16.msra.mxu0 %v357
  %702 = vmatpush.bf16.msra.mxu0 %v354
  %703 = vmatpush.bf16.msra.mxu0 %v158
  %704 = vmatpush.bf16.msra.mxu0 %v155
  %705 = vmatmul.bf16.gmra.mxu0 %v669
  %v706 = vpop.f32.mrf.mxu0
  %v707 = vadd.f32 0.0, %v706
  %v708 = vpop.f32.mrf.mxu0
  %709 = vdwg.mxu0
  %v710 = vadd.f32 %v694, %v56
  %v711 = vadd.f32 %v707, %v57
  %v712 = vxor.u32 %v710, 2147483648
  %v713 = vmul.f32 %v712, 1.442695
  %v714 = vpow.pop %v713
  %v715 = vadd.f32 %v714, 1.0
  %v716 = vrcp.pop %v715
  %v717 = vmul.f32 %v715, %v716
  %v718 = vsub.f32 1.0, %v717
  %v719 = vmul.f32 %v716, %v718
  %v720 = vadd.f32 %v716, %v719
  %vm721 = vweird.f32 %v715
  %vm722 = vweird.f32 %v716
  %vm723 = vmor %vm721, %vm722
  %v724 = vsel %vm723, %v716, %v720
  %v725 = vand.u32 2147483647, %v715
  %vm726 = vcmp.eq.f32.partialorder %v725, 8.507059e+37
  %v727 = vand.u32 %v715, 2147483648
  %v728 = vor.u32 1.1754944e-38, %v727
  %v729 = vsel %vm726, %v728, %v724
  %v730 = vmul.f32 1.0, %v729
  %v731 = vtanh.pop %v711
  %v732 = vxor.u32 %v711, 2147483648
  %v733 = vmul.f32 %v732, 1.442695
  %v734 = vpow.pop %v733
  %v735 = vadd.f32 %v734, 1.0
  %v736 = vrcp.pop %v735
  %v737 = vmul.f32 %v735, %v736
  %v738 = vsub.f32 1.0, %v737
  %v739 = vmul.f32 %v736, %v738
  %v740 = vadd.f32 %v736, %v739
  %vm741 = vweird.f32 %v735
  %vm742 = vweird.f32 %v736
  %vm743 = vmor %vm741, %vm742
  %v744 = vsel %vm743, %v736, %v740
  %v745 = vand.u32 2147483647, %v735
  %vm746 = vcmp.eq.f32.partialorder %v745, 8.507059e+37
  %v747 = vand.u32 %v735, 2147483648
  %v748 = vor.u32 1.1754944e-38, %v747
  %v749 = vsel %vm746, %v748, %v744
  %v750 = vmul.f32 1.0, %v749
  %v751 = vmul.f32 %v730, %v613
  %v752 = vmul.f32 %v730, %v731
  %754 = vrot.lane.b32.xlu0 %v752, 64
  %v755 = vpop.permute.xlu0 %754
  %v757 = vadd.f32 %v751, %v755
  %v758 = vtanh.pop %v757
  %v759 = vmul.f32 %v750, %v758
  %v760 = vpack.c.bf16 %v759, %v759
  %v761 = vadd.f32 %v95, %v681
  %v762 = vxor.u32 %v761, 2147483648
  %v763 = vmul.f32 %v762, 1.442695
  %v764 = vpow.pop %v763
  %v765 = vadd.f32 %v764, 1.0
  %v766 = vrcp.pop %v765
  %v767 = vmul.f32 %v765, %v766
  %v768 = vsub.f32 1.0, %v767
  %v769 = vmul.f32 %v766, %v768
  %v770 = vadd.f32 %v766, %v769
  %vm771 = vweird.f32 %v765
  %vm772 = vweird.f32 %v766
  %vm773 = vmor %vm771, %vm772
  %v774 = vsel %vm773, %v766, %v770
  %v775 = vand.u32 2147483647, %v765
  %vm776 = vcmp.eq.f32.partialorder %v775, 8.507059e+37
  %v777 = vand.u32 %v765, 2147483648
  %v778 = vor.u32 1.1754944e-38, %v777
  %v779 = vsel %vm776, %v778, %v774
  %v780 = vmul.f32 1.0, %v779
  %v781 = vtanh.pop %v761
  %v782 = vmul.f32 %v780, %v648
  %784 = vrot.lane.b32.xlu0 %v781, 64
  %v785 = vpop.permute.xlu0 %784
  %v787 = vmul.f32 %v780, %v785
  %789 = vrot.lane.b32.xlu0 %v787, 32
  %v790 = vpop.permute.xlu0 %789
  %v792 = vadd.f32 %v782, %v790
  %v793 = vtanh.pop %v792
  %795 = vrot.lane.b32.xlu0 %v793, 64
  %v796 = vpop.permute.xlu0 %795
  %v798 = vmul.f32 %v780, %v796
  %v799 = vpack.c.bf16 %v798, %v798
  %v801 = vunpack.c.l.b16 %v799
  %v802 = vpack.c.b16 %v801, %v801
  %803 = vrot.lane.b32.xlu0 %v802, 32
  %v804 = vpop.permute.xlu0 %803
  %v806 = vunpack.c.l.b16 %v760
  %v807 = vpack.c.b16 %v806, %v806
  %808 = vrot.lane.b32.xlu0 %v807, 96
  %v809 = vpop.permute.xlu0 %808
  %v812 = vsel %vm81, %v804, %v809
  %v813 = vsel %vm376, %v812, 0
  %815 = vmatpush.bf16.msra.mxu0 0
  %816 = vmatpush.bf16.msra.mxu0 0
  %817 = vmatpush.bf16.msra.mxu0 %v361
  %818 = vmatpush.bf16.msra.mxu0 %v358
  %819 = vmatpush.bf16.msra.mxu0 %v355
  %820 = vmatpush.bf16.msra.mxu0 %v352
  %821 = vmatpush.bf16.msra.mxu0 %v156
  %822 = vmatpush.bf16.msra.mxu0 %v153
  %823 = vmatmul.bf16.gmra.mxu0 %v813
  %v824 = vpop.f32.mrf.mxu0
  %v825 = vadd.f32 0.0, %v824
  %v826 = vpop.f32.mrf.mxu0
  %827 = vdwg.mxu0
  %828 = vmatpush.bf16.msra.mxu0 0
  %829 = vmatpush.bf16.msra.mxu0 0
  %830 = vmatpush.bf16.msra.mxu0 %v362
  %831 = vmatpush.bf16.msra.mxu0 %v359
  %832 = vmatpush.bf16.msra.mxu0 %v356
  %833 = vmatpush.bf16.msra.mxu0 %v353
  %834 = vmatpush.bf16.msra.mxu0 %v157
  %835 = vmatpush.bf16.msra.mxu0 %v154
  %836 = vmatmul.bf16.gmra.mxu0 %v813
  %v837 = vpop.f32.mrf.mxu0
  %v838 = vadd.f32 0.0, %v837
  %v839 = vpop.f32.mrf.mxu0
  %840 = vdwg.mxu0
  %841 = vmatpush.bf16.msra.mxu0 0
  %842 = vmatpush.bf16.msra.mxu0 0
  %843 = vmatpush.bf16.msra.mxu0 %v363
  %844 = vmatpush.bf16.msra.mxu0 %v360
  %845 = vmatpush.bf16.msra.mxu0 %v357
  %846 = vmatpush.bf16.msra.mxu0 %v354
  %847 = vmatpush.bf16.msra.mxu0 %v158
  %848 = vmatpush.bf16.msra.mxu0 %v155
  %849 = vmatmul.bf16.gmra.mxu0 %v813
  %v850 = vpop.f32.mrf.mxu0
  %v851 = vadd.f32 0.0, %v850
  %v852 = vpop.f32.mrf.mxu0
  %853 = vdwg.mxu0
  %v854 = vadd.f32 %v838, %v56
  %v855 = vadd.f32 %v851, %v57
  %v856 = vxor.u32 %v854, 2147483648
  %v857 = vmul.f32 %v856, 1.442695
  %v858 = vpow.pop %v857
  %v859 = vadd.f32 %v858, 1.0
  %v860 = vrcp.pop %v859
  %v861 = vmul.f32 %v859, %v860
  %v862 = vsub.f32 1.0, %v861
  %v863 = vmul.f32 %v860, %v862
  %v864 = vadd.f32 %v860, %v863
  %vm865 = vweird.f32 %v859
  %vm866 = vweird.f32 %v860
  %vm867 = vmor %vm865, %vm866
  %v868 = vsel %vm867, %v860, %v864
  %v869 = vand.u32 2147483647, %v859
  %vm870 = vcmp.eq.f32.partialorder %v869, 8.507059e+37
  %v871 = vand.u32 %v859, 2147483648
  %v872 = vor.u32 1.1754944e-38, %v871
  %v873 = vsel %vm870, %v872, %v868
  %v874 = vmul.f32 1.0, %v873
  %v875 = vtanh.pop %v855
  %v876 = vxor.u32 %v855, 2147483648
  %v877 = vmul.f32 %v876, 1.442695
  %v878 = vpow.pop %v877
  %v879 = vadd.f32 %v878, 1.0
  %v880 = vrcp.pop %v879
  %v881 = vmul.f32 %v879, %v880
  %v882 = vsub.f32 1.0, %v881
  %v883 = vmul.f32 %v880, %v882
  %v884 = vadd.f32 %v880, %v883
  %vm885 = vweird.f32 %v879
  %vm886 = vweird.f32 %v880
  %vm887 = vmor %vm885, %vm886
  %v888 = vsel %vm887, %v880, %v884
  %v889 = vand.u32 2147483647, %v879
  %vm890 = vcmp.eq.f32.partialorder %v889, 8.507059e+37
  %v891 = vand.u32 %v879, 2147483648
  %v892 = vor.u32 1.1754944e-38, %v891
  %v893 = vsel %vm890, %v892, %v888
  %v894 = vmul.f32 1.0, %v893
  %v895 = vmul.f32 %v874, %v757
  %v896 = vmul.f32 %v874, %v875
  %898 = vrot.lane.b32.xlu0 %v896, 64
  %v899 = vpop.permute.xlu0 %898
  %v901 = vadd.f32 %v895, %v899
  %v902 = vtanh.pop %v901
  %v903 = vmul.f32 %v894, %v902
  %v904 = vpack.c.bf16 %v903, %v903
  %v905 = vadd.f32 %v95, %v825
  %v906 = vxor.u32 %v905, 2147483648
  %v907 = vmul.f32 %v906, 1.442695
  %v908 = vpow.pop %v907
  %v909 = vadd.f32 %v908, 1.0
  %v910 = vrcp.pop %v909
  %v911 = vmul.f32 %v909, %v910
  %v912 = vsub.f32 1.0, %v911
  %v913 = vmul.f32 %v910, %v912
  %v914 = vadd.f32 %v910, %v913
  %vm915 = vweird.f32 %v909
  %vm916 = vweird.f32 %v910
  %vm917 = vmor %vm915, %vm916
  %v918 = vsel %vm917, %v910, %v914
  %v919 = vand.u32 2147483647, %v909
  %vm920 = vcmp.eq.f32.partialorder %v919, 8.507059e+37
  %v921 = vand.u32 %v909, 2147483648
  %v922 = vor.u32 1.1754944e-38, %v921
  %v923 = vsel %vm920, %v922, %v918
  %v924 = vmul.f32 1.0, %v923
  %v925 = vtanh.pop %v905
  %v926 = vmul.f32 %v924, %v792
  %928 = vrot.lane.b32.xlu0 %v925, 64
  %v929 = vpop.permute.xlu0 %928
  %v931 = vmul.f32 %v924, %v929
  %933 = vrot.lane.b32.xlu0 %v931, 32
  %v934 = vpop.permute.xlu0 %933
  %v936 = vadd.f32 %v926, %v934
  %v937 = vtanh.pop %v936
  %939 = vrot.lane.b32.xlu0 %v937, 64
  %v940 = vpop.permute.xlu0 %939
  %v942 = vmul.f32 %v924, %v940
  %v943 = vpack.c.bf16 %v942, %v942
  %v945 = vunpack.c.l.b16 %v943
  %v946 = vpack.c.b16 %v945, %v945
  %947 = vrot.lane.b32.xlu0 %v946, 32
  %v948 = vpop.permute.xlu0 %947
  %v950 = vunpack.c.l.b16 %v904
  %v951 = vpack.c.b16 %v950, %v950
  %952 = vrot.lane.b32.xlu0 %v951, 96
  %v953 = vpop.permute.xlu0 %952
  %v956 = vsel %vm81, %v948, %v953
  %v957 = vsel %vm376, %v956, 0
  %959 = vmatpush.bf16.msra.mxu0 0
  %960 = vmatpush.bf16.msra.mxu0 0
  %961 = vmatpush.bf16.msra.mxu0 %v361
  %962 = vmatpush.bf16.msra.mxu0 %v358
  %963 = vmatpush.bf16.msra.mxu0 %v355
  %964 = vmatpush.bf16.msra.mxu0 %v352
  %965 = vmatpush.bf16.msra.mxu0 %v156
  %966 = vmatpush.bf16.msra.mxu0 %v153
  %967 = vmatmul.bf16.gmra.mxu0 %v957
  %v968 = vpop.f32.mrf.mxu0
  %v969 = vadd.f32 0.0, %v968
  %v970 = vpop.f32.mrf.mxu0
  %971 = vdwg.mxu0
  %972 = vmatpush.bf16.msra.mxu0 0
  %973 = vmatpush.bf16.msra.mxu0 0
  %974 = vmatpush.bf16.msra.mxu0 %v362
  %975 = vmatpush.bf16.msra.mxu0 %v359
  %976 = vmatpush.bf16.msra.mxu0 %v356
  %977 = vmatpush.bf16.msra.mxu0 %v353
  %978 = vmatpush.bf16.msra.mxu0 %v157
  %979 = vmatpush.bf16.msra.mxu0 %v154
  %980 = vmatmul.bf16.gmra.mxu0 %v957
  %v981 = vpop.f32.mrf.mxu0
  %v982 = vadd.f32 0.0, %v981
  %v983 = vpop.f32.mrf.mxu0
  %984 = vdwg.mxu0
  %985 = vmatpush.bf16.msra.mxu0 0
  %986 = vmatpush.bf16.msra.mxu0 0
  %987 = vmatpush.bf16.msra.mxu0 %v363
  %988 = vmatpush.bf16.msra.mxu0 %v360
  %989 = vmatpush.bf16.msra.mxu0 %v357
  %990 = vmatpush.bf16.msra.mxu0 %v354
  %991 = vmatpush.bf16.msra.mxu0 %v158
  %992 = vmatpush.bf16.msra.mxu0 %v155
  %993 = vmatmul.bf16.gmra.mxu0 %v957
  %v994 = vpop.f32.mrf.mxu0
  %v995 = vadd.f32 0.0, %v994
  %v996 = vpop.f32.mrf.mxu0
  %997 = vdwg.mxu0
  %v998 = vadd.f32 %v982, %v56
  %v999 = vadd.f32 %v995, %v57
  %v1000 = vxor.u32 %v998, 2147483648
  %v1001 = vmul.f32 %v1000, 1.442695
  %v1002 = vpow.pop %v1001
  %v1003 = vadd.f32 %v1002, 1.0
  %v1004 = vrcp.pop %v1003
  %v1005 = vmul.f32 %v1003, %v1004
  %v1006 = vsub.f32 1.0, %v1005
  %v1007 = vmul.f32 %v1004, %v1006
  %v1008 = vadd.f32 %v1004, %v1007
  %vm1009 = vweird.f32 %v1003
  %vm1010 = vweird.f32 %v1004
  %vm1011 = vmor %vm1009, %vm1010
  %v1012 = vsel %vm1011, %v1004, %v1008
  %v1013 = vand.u32 2147483647, %v1003
  %vm1014 = vcmp.eq.f32.partialorder %v1013, 8.507059e+37
  %v1015 = vand.u32 %v1003, 2147483648
  %v1016 = vor.u32 1.1754944e-38, %v1015
  %v1017 = vsel %vm1014, %v1016, %v1012
  %v1018 = vmul.f32 1.0, %v1017
  %v1019 = vtanh.pop %v999
  %v1020 = vxor.u32 %v999, 2147483648
  %v1021 = vmul.f32 %v1020, 1.442695
  %v1022 = vpow.pop %v1021
  %v1023 = vadd.f32 %v1022, 1.0
  %v1024 = vrcp.pop %v1023
  %v1025 = vmul.f32 %v1023, %v1024
  %v1026 = vsub.f32 1.0, %v1025
  %v1027 = vmul.f32 %v1024, %v1026
  %v1028 = vadd.f32 %v1024, %v1027
  %vm1029 = vweird.f32 %v1023
  %vm1030 = vweird.f32 %v1024
  %vm1031 = vmor %vm1029, %vm1030
  %v1032 = vsel %vm1031, %v1024, %v1028
  %v1033 = vand.u32 2147483647, %v1023
  %vm1034 = vcmp.eq.f32.partialorder %v1033, 8.507059e+37
  %v1035 = vand.u32 %v1023, 2147483648
  %v1036 = vor.u32 1.1754944e-38, %v1035
  %v1037 = vsel %vm1034, %v1036, %v1032
  %v1038 = vmul.f32 1.0, %v1037
  %v1039 = vmul.f32 %v1018, %v901
  %v1040 = vmul.f32 %v1018, %v1019
  %1042 = vrot.lane.b32.xlu0 %v1040, 64
  %v1043 = vpop.permute.xlu0 %1042
  %v1045 = vadd.f32 %v1039, %v1043
  %v1046 = vtanh.pop %v1045
  %v1047 = vmul.f32 %v1038, %v1046
  %v1048 = vpack.c.bf16 %v1047, %v1047
  %v1049 = vadd.f32 %v95, %v969
  %v1050 = vxor.u32 %v1049, 2147483648
  %v1051 = vmul.f32 %v1050, 1.442695
  %v1052 = vpow.pop %v1051
  %v1053 = vadd.f32 %v1052, 1.0
  %v1054 = vrcp.pop %v1053
  %v1055 = vmul.f32 %v1053, %v1054
  %v1056 = vsub.f32 1.0, %v1055
  %v1057 = vmul.f32 %v1054, %v1056
  %v1058 = vadd.f32 %v1054, %v1057
  %vm1059 = vweird.f32 %v1053
  %vm1060 = vweird.f32 %v1054
  %vm1061 = vmor %vm1059, %vm1060
  %v1062 = vsel %vm1061, %v1054, %v1058
  %v1063 = vand.u32 2147483647, %v1053
  %vm1064 = vcmp.eq.f32.partialorder %v1063, 8.507059e+37
  %v1065 = vand.u32 %v1053, 2147483648
  %v1066 = vor.u32 1.1754944e-38, %v1065
  %v1067 = vsel %vm1064, %v1066, %v1062
  %v1068 = vmul.f32 1.0, %v1067
  %v1069 = vtanh.pop %v1049
  %v1070 = vmul.f32 %v1068, %v936
  %1072 = vrot.lane.b32.xlu0 %v1069, 64
  %v1073 = vpop.permute.xlu0 %1072
  %v1075 = vmul.f32 %v1068, %v1073
  %1077 = vrot.lane.b32.xlu0 %v1075, 32
  %v1078 = vpop.permute.xlu0 %1077
  %v1080 = vadd.f32 %v1070, %v1078
  %v1081 = vtanh.pop %v1080
  %1083 = vrot.lane.b32.xlu0 %v1081, 64
  %v1084 = vpop.permute.xlu0 %1083
  %v1086 = vmul.f32 %v1068, %v1084
  %v1087 = vpack.c.bf16 %v1086, %v1086
  %v1089 = vunpack.c.l.b16 %v1087
  %v1090 = vpack.c.b16 %v1089, %v1089
  %1091 = vrot.lane.b32.xlu0 %v1090, 32
  %v1092 = vpop.permute.xlu0 %1091
  %v1094 = vunpack.c.l.b16 %v1048
  %v1095 = vpack.c.b16 %v1094, %v1094
  %1096 = vrot.lane.b32.xlu0 %v1095, 96
  %v1097 = vpop.permute.xlu0 %1096
  %v1100 = vsel %vm81, %v1092, %v1097
  %v1101 = vsel %vm376, %v1100, 0
  %1103 = vmatpush.bf16.msra.mxu0 0
  %1104 = vmatpush.bf16.msra.mxu0 0
  %1105 = vmatpush.bf16.msra.mxu0 %v361
  %1106 = vmatpush.bf16.msra.mxu0 %v358
  %1107 = vmatpush.bf16.msra.mxu0 %v355
  %1108 = vmatpush.bf16.msra.mxu0 %v352
  %1109 = vmatpush.bf16.msra.mxu0 %v156
  %1110 = vmatpush.bf16.msra.mxu0 %v153
  %1111 = vmatmul.bf16.gmra.mxu0 %v1101
  %v1112 = vpop.f32.mrf.mxu0
  %v1113 = vadd.f32 0.0, %v1112
  %v1114 = vpop.f32.mrf.mxu0
  %1115 = vdwg.mxu0
  %1116 = vmatpush.bf16.msra.mxu0 0
  %1117 = vmatpush.bf16.msra.mxu0 0
  %1118 = vmatpush.bf16.msra.mxu0 %v362
  %1119 = vmatpush.bf16.msra.mxu0 %v359
  %1120 = vmatpush.bf16.msra.mxu0 %v356
  %1121 = vmatpush.bf16.msra.mxu0 %v353
  %1122 = vmatpush.bf16.msra.mxu0 %v157
  %1123 = vmatpush.bf16.msra.mxu0 %v154
  %1124 = vmatmul.bf16.gmra.mxu0 %v1101
  %v1125 = vpop.f32.mrf.mxu0
  %v1126 = vadd.f32 0.0, %v1125
  %v1127 = vpop.f32.mrf.mxu0
  %1128 = vdwg.mxu0
  %1129 = vmatpush.bf16.msra.mxu0 0
  %1130 = vmatpush.bf16.msra.mxu0 0
  %1131 = vmatpush.bf16.msra.mxu0 %v363
  %1132 = vmatpush.bf16.msra.mxu0 %v360
  %1133 = vmatpush.bf16.msra.mxu0 %v357
  %1134 = vmatpush.bf16.msra.mxu0 %v354
  %1135 = vmatpush.bf16.msra.mxu0 %v158
  %1136 = vmatpush.bf16.msra.mxu0 %v155
  %1137 = vmatmul.bf16.gmra.mxu0 %v1101
  %v1138 = vpop.f32.mrf.mxu0
  %v1139 = vadd.f32 0.0, %v1138
  %v1140 = vpop.f32.mrf.mxu0
  %1141 = vdwg.mxu0
  %v1142 = vadd.f32 %v1126, %v56
  %v1143 = vadd.f32 %v1139, %v57
  %v1144 = vxor.u32 %v1142, 2147483648
  %v1145 = vmul.f32 %v1144, 1.442695
  %v1146 = vpow.pop %v1145
  %v1147 = vadd.f32 %v1146, 1.0
  %v1148 = vrcp.pop %v1147
  %v1149 = vmul.f32 %v1147, %v1148
  %v1150 = vsub.f32 1.0, %v1149
  %v1151 = vmul.f32 %v1148, %v1150
  %v1152 = vadd.f32 %v1148, %v1151
  %vm1153 = vweird.f32 %v1147
  %vm1154 = vweird.f32 %v1148
  %vm1155 = vmor %vm1153, %vm1154
  %v1156 = vsel %vm1155, %v1148, %v1152
  %v1157 = vand.u32 2147483647, %v1147
  %vm1158 = vcmp.eq.f32.partialorder %v1157, 8.507059e+37
  %v1159 = vand.u32 %v1147, 2147483648
  %v1160 = vor.u32 1.1754944e-38, %v1159
  %v1161 = vsel %vm1158, %v1160, %v1156
  %v1162 = vmul.f32 1.0, %v1161
  %v1163 = vtanh.pop %v1143
  %v1164 = vxor.u32 %v1143, 2147483648
  %v1165 = vmul.f32 %v1164, 1.442695
  %v1166 = vpow.pop %v1165
  %v1167 = vadd.f32 %v1166, 1.0
  %v1168 = vrcp.pop %v1167
  %v1169 = vmul.f32 %v1167, %v1168
  %v1170 = vsub.f32 1.0, %v1169
  %v1171 = vmul.f32 %v1168, %v1170
  %v1172 = vadd.f32 %v1168, %v1171
  %vm1173 = vweird.f32 %v1167
  %vm1174 = vweird.f32 %v1168
  %vm1175 = vmor %vm1173, %vm1174
  %v1176 = vsel %vm1175, %v1168, %v1172
  %v1177 = vand.u32 2147483647, %v1167
  %vm1178 = vcmp.eq.f32.partialorder %v1177, 8.507059e+37
  %v1179 = vand.u32 %v1167, 2147483648
  %v1180 = vor.u32 1.1754944e-38, %v1179
  %v1181 = vsel %vm1178, %v1180, %v1176
  %v1182 = vmul.f32 1.0, %v1181
  %v1183 = vmul.f32 %v1162, %v1045
  %v1184 = vmul.f32 %v1162, %v1163
  %1186 = vrot.lane.b32.xlu0 %v1184, 64
  %v1187 = vpop.permute.xlu0 %1186
  %v1189 = vadd.f32 %v1183, %v1187
  %v1190 = vtanh.pop %v1189
  %v1191 = vmul.f32 %v1182, %v1190
  %v1192 = vpack.c.bf16 %v1191, %v1191
  %v1193 = vadd.f32 %v95, %v1113
  %v1194 = vxor.u32 %v1193, 2147483648
  %v1195 = vmul.f32 %v1194, 1.442695
  %v1196 = vpow.pop %v1195
  %v1197 = vadd.f32 %v1196, 1.0
  %v1198 = vrcp.pop %v1197
  %v1199 = vmul.f32 %v1197, %v1198
  %v1200 = vsub.f32 1.0, %v1199
  %v1201 = vmul.f32 %v1198, %v1200
  %v1202 = vadd.f32 %v1198, %v1201
  %vm1203 = vweird.f32 %v1197
  %vm1204 = vweird.f32 %v1198
  %vm1205 = vmor %vm1203, %vm1204
  %v1206 = vsel %vm1205, %v1198, %v1202
  %v1207 = vand.u32 2147483647, %v1197
  %vm1208 = vcmp.eq.f32.partialorder %v1207, 8.507059e+37
  %v1209 = vand.u32 %v1197, 2147483648
  %v1210 = vor.u32 1.1754944e-38, %v1209
  %v1211 = vsel %vm1208, %v1210, %v1206
  %v1212 = vmul.f32 1.0, %v1211
  %v1213 = vtanh.pop %v1193
  %v1214 = vmul.f32 %v1212, %v1080
  %1216 = vrot.lane.b32.xlu0 %v1213, 64
  %v1217 = vpop.permute.xlu0 %1216
  %v1219 = vmul.f32 %v1212, %v1217
  %1221 = vrot.lane.b32.xlu0 %v1219, 32
  %v1222 = vpop.permute.xlu0 %1221
  %v1224 = vadd.f32 %v1214, %v1222
  %v1225 = vtanh.pop %v1224
  %1227 = vrot.lane.b32.xlu0 %v1225, 64
  %v1228 = vpop.permute.xlu0 %1227
  %v1230 = vmul.f32 %v1212, %v1228
  %v1231 = vpack.c.bf16 %v1230, %v1230
  %v1233 = vunpack.c.l.b16 %v1231
  %v1234 = vpack.c.b16 %v1233, %v1233
  %1235 = vrot.lane.b32.xlu0 %v1234, 32
  %v1236 = vpop.permute.xlu0 %1235
  %v1238 = vunpack.c.l.b16 %v1192
  %v1239 = vpack.c.b16 %v1238, %v1238
  %1240 = vrot.lane.b32.xlu0 %v1239, 96
  %v1241 = vpop.permute.xlu0 %1240
  %v1244 = vsel %vm81, %v1236, %v1241
  %v1245 = vsel %vm376, %v1244, 0
  %1247 = vmatpush.bf16.msra.mxu0 0
  %1248 = vmatpush.bf16.msra.mxu0 0
  %1249 = vmatpush.bf16.msra.mxu0 %v362
  %1250 = vmatpush.bf16.msra.mxu0 %v359
  %1251 = vmatpush.bf16.msra.mxu0 %v356
  %1252 = vmatpush.bf16.msra.mxu0 %v353
  %1253 = vmatpush.bf16.msra.mxu0 %v157
  %1254 = vmatpush.bf16.msra.mxu0 %v154
  %1255 = vmatmul.bf16.gmra.mxu0 %v1245
  %v1256 = vpop.f32.mrf.mxu0
  %v1257 = vadd.f32 0.0, %v1256
  %v1258 = vpop.f32.mrf.mxu0
  %1259 = vdwg.mxu0
  %1260 = vmatpush.bf16.msra.mxu0 0
  %1261 = vmatpush.bf16.msra.mxu0 0
  %1262 = vmatpush.bf16.msra.mxu0 %v363
  %1263 = vmatpush.bf16.msra.mxu0 %v360
  %1264 = vmatpush.bf16.msra.mxu0 %v357
  %1265 = vmatpush.bf16.msra.mxu0 %v354
  %1266 = vmatpush.bf16.msra.mxu0 %v158
  %1267 = vmatpush.bf16.msra.mxu0 %v155
  %1268 = vmatmul.bf16.gmra.mxu0 %v1245
  %v1269 = vpop.f32.mrf.mxu0
  %v1270 = vadd.f32 0.0, %v1269
  %v1271 = vpop.f32.mrf.mxu0
  %1272 = vdwg.mxu0
  %v1273 = vadd.f32 %v1257, %v56
  %v1274 = vadd.f32 %v1270, %v57
  %v1275 = vxor.u32 %v1273, 2147483648
  %v1276 = vmul.f32 %v1275, 1.442695
  %v1277 = vpow.pop %v1276
  %v1278 = vadd.f32 %v1277, 1.0
  %v1279 = vrcp.pop %v1278
  %v1280 = vmul.f32 %v1278, %v1279
  %v1281 = vsub.f32 1.0, %v1280
  %v1282 = vmul.f32 %v1279, %v1281
  %v1283 = vadd.f32 %v1279, %v1282
  %vm1284 = vweird.f32 %v1278
  %vm1285 = vweird.f32 %v1279
  %vm1286 = vmor %vm1284, %vm1285
  %v1287 = vsel %vm1286, %v1279, %v1283
  %v1288 = vand.u32 2147483647, %v1278
  %vm1289 = vcmp.eq.f32.partialorder %v1288, 8.507059e+37
  %v1290 = vand.u32 %v1278, 2147483648
  %v1291 = vor.u32 1.1754944e-38, %v1290
  %v1292 = vsel %vm1289, %v1291, %v1287
  %v1293 = vmul.f32 1.0, %v1292
  %v1294 = vtanh.pop %v1274
  %v1295 = vxor.u32 %v1274, 2147483648
  %v1296 = vmul.f32 %v1295, 1.442695
  %v1297 = vpow.pop %v1296
  %v1298 = vadd.f32 %v1297, 1.0
  %v1299 = vrcp.pop %v1298
  %v1300 = vmul.f32 %v1298, %v1299
  %v1301 = vsub.f32 1.0, %v1300
  %v1302 = vmul.f32 %v1299, %v1301
  %v1303 = vadd.f32 %v1299, %v1302
  %vm1304 = vweird.f32 %v1298
  %vm1305 = vweird.f32 %v1299
  %vm1306 = vmor %vm1304, %vm1305
  %v1307 = vsel %vm1306, %v1299, %v1303
  %v1308 = vand.u32 2147483647, %v1298
  %vm1309 = vcmp.eq.f32.partialorder %v1308, 8.507059e+37
  %v1310 = vand.u32 %v1298, 2147483648
  %v1311 = vor.u32 1.1754944e-38, %v1310
  %v1312 = vsel %vm1309, %v1311, %v1307
  %v1313 = vmul.f32 1.0, %v1312
  %v1314 = vmul.f32 %v1293, %v1189
  %v1315 = vmul.f32 %v1293, %v1294
  %1317 = vrot.lane.b32.xlu0 %v1315, 64
  %v1318 = vpop.permute.xlu0 %1317
  %v1320 = vadd.f32 %v1314, %v1318
  %v1321 = vtanh.pop %v1320
  %v1322 = vmul.f32 %v1313, %v1321
  %v1324 = vrot.slane %v471, 6
  %v1327 = vrot.slane %v615, 4
  %v1330 = vrot.slane %v759, 2
  %v1333 = vrot.slane %v1047, 6
  %v1336 = vrot.slane %v1191, 4
  %v1339 = vrot.slane %v1322, 2
  %vm1341 = vcmask 1041408
  %v1342 = vsel %vm1341, %v254, %v1324
  %vm1343 = vcmask 1043456
  %v1344 = vsel %vm1343, %v1342, %v1327
  %vm1345 = vcmask 1045504
  %v1346 = vsel %vm1345, %v1344, %v1330
  %v1347 = vsel %vm1341, %v903, %v1333
  %v1348 = vsel %vm1343, %v1347, %v1336
  %v1349 = vsel %vm1345, %v1348, %v1339
  %v1350 = vpack.c.bf16 %v1349, %v1346
  %v1351 = vld [vmem:[%s5] sm:$0xf]
  %v1352 = vld [vmem:[%s5 + $0x4] sm:$0xf]
  %v1353 = vld [vmem:[%s5 + $0x8] sm:$0xf]
  %v1354 = vld [vmem:[%s5 + $0xc] sm:$0xf]
  %v1355 = vld [vmem:[%s5 + $0x10] sm:$0xf]
  %v1356 = vld [vmem:[%s5 + $0x14] sm:$0xf]
  %v1357 = vld [vmem:[%s5 + $0x18] sm:$0xf]
  %v1358 = vld [vmem:[%s5 + $0x1c] sm:$0xf]
  %v1359 = vld [vmem:[#allocation2] sm:$0x1]
  %v1361 = vperm.slane %v1359, 0
  %1364 = vrot.lane.b32.xlu0 %v1350, 64
  %v1365 = vpop.permute.xlu0 %1364
  %v1374 = vunpack.c.l.b16 %v1351
  %v1375 = vunpack.c.l.b16 %v1352
  %v1376 = vunpack.c.l.b16 %v1353
  %v1377 = vunpack.c.l.b16 %v1354
  %v1378 = vunpack.c.l.b16 %v1355
  %v1379 = vunpack.c.l.b16 %v1356
  %v1380 = vunpack.c.l.b16 %v1357
  %v1381 = vunpack.c.l.b16 %v1358
  %v1382 = vpack.c.b16 %v1375, %v1374
  %v1383 = vpack.c.b16 %v1377, %v1376
  %v1384 = vpack.c.b16 %v1379, %v1378
  %v1385 = vpack.c.b16 %v1381, %v1380
  %vm1390 = vcmask 523264
  %v1392 = vsel %vm1390, %v1365, 0
  %1394 = vmatpush.bf16.msra.mxu0 0
  %1395 = vmatpush.bf16.msra.mxu0 0
  %1396 = vmatpush.bf16.msra.mxu0 0
  %1397 = vmatpush.bf16.msra.mxu0 0
  %1398 = vmatpush.bf16.msra.mxu0 %v1385
  %1399 = vmatpush.bf16.msra.mxu0 %v1384
  %1400 = vmatpush.bf16.msra.mxu0 %v1383
  %1401 = vmatpush.bf16.msra.mxu0 %v1382
  %1402 = vmatmul.bf16.gmra.mxu0 %v1392
  %v1403 = vpop.f32.mrf.mxu0
  %v1404 = vadd.f32 %v1361, %v1403
  %v1405 = vpop.f32.mrf.mxu0
  %v1406 = vadd.f32 %v1361, %v1405
  %1407 = vdwg.mxu0
  %vm1408 = vcmask 7168
  %1409 = vst.msk [vmem:[%s7] sm:$0xff] %vm1408, %v1404
  %1410 = vst.msk [vmem:[%s7 + $0x8] sm:$0xff] %vm1408, %v1406
  // Predicated region
  $region30: #{decoder_forward.1} parent=0 // pred_check
    _
  $region31: #{decoder_forward.1} parent=0 // pred_check_branch
    %1412 = sbr.rel (0) target = $region33
  $region32: #{decoder_forward.1} parent=0 // pred_region
    _
  $region33: #{decoder_forward.1} parent=0 // pred_fallthru
    _
  // Predicated region
  $region34: #{decoder_forward.1} parent=0 // pred_check
    _
  $region35: #{decoder_forward.1} parent=0 // pred_check_branch
    %1414 = sbr.rel (0) target = $region37
  $region36: #{decoder_forward.1} parent=0 // pred_region
    _
  $region37: #{decoder_forward.1} parent=0 // pred_fallthru
    _

</llo_original>
